<compile_context>
chip_gen: v7x
topology: tpu7x:2x2x1
jax: 0.10.0
libtpu: 0.0.40
codegen_flags: <defaults>
</compile_context>

<pallas_src>
import numpy as np
import jax
import jax.numpy as jnp
from jax.experimental import pallas as pl
from jax.experimental.pallas import tpu as pltpu


# ---------------------------------------------------------------------------
# Fused Pallas kernel: gate gconv + candidate gconv + GRU update
# ---------------------------------------------------------------------------
def _fused_ugcgru_kernel(x_ref, h_ref, a_ref, wx_ref, wh_ref, b_ref, out_ref):
    """new_h = u*h + (1-u)*tanh(gconv(x, r*h)),  r,u = sigmoid(gconv(x, h)).

    wx_ref : (6, Di, U)  x-side weight blocks  [r0, r1, u0, u1, c0, c1]
    wh_ref : (6, U,  U)  h-side weight blocks  [r0, r1, u0, u1, c0, c1]
    b_ref  : (3, 1,  U)  biases                [b_r, b_u, b_c]
    (suffix 0 = identity term, 1 = A-propagated term)
    """
    f32 = jnp.float32
    x = x_ref[0]                                    # (N, Di)
    h = h_ref[0]                                    # (N, U)
    a = a_ref[...]                                  # (N, N)

    # Graph-propagated terms. A@x is shared by gate and candidate gconvs.
    ax = jnp.dot(a, x, preferred_element_type=f32)  # (N, Di)
    ah = jnp.dot(a, h, preferred_element_type=f32)  # (N, U)

    # Reset / update gates from separate weight column blocks (no lane slicing).
    r = jax.nn.sigmoid(
        jnp.dot(x,  wx_ref[0], preferred_element_type=f32)
        + jnp.dot(ax, wx_ref[1], preferred_element_type=f32)
        + jnp.dot(h,  wh_ref[0], preferred_element_type=f32)
        + jnp.dot(ah, wh_ref[1], preferred_element_type=f32)
        + b_ref[0])
    u = jax.nn.sigmoid(
        jnp.dot(x,  wx_ref[2], preferred_element_type=f32)
        + jnp.dot(ax, wx_ref[3], preferred_element_type=f32)
        + jnp.dot(h,  wh_ref[2], preferred_element_type=f32)
        + jnp.dot(ah, wh_ref[3], preferred_element_type=f32)
        + b_ref[1])

    rh = (r * h).astype(h.dtype)                    # stays in VMEM / vregs
    arh = jnp.dot(a, rh, preferred_element_type=f32)

    c = jnp.tanh(
        jnp.dot(x,   wx_ref[4], preferred_element_type=f32)
        + jnp.dot(ax,  wx_ref[5], preferred_element_type=f32)
        + jnp.dot(rh,  wh_ref[4], preferred_element_type=f32)
        + jnp.dot(arh, wh_ref[5], preferred_element_type=f32)
        + b_ref[2])

    out_ref[0] = (u * h + (1.0 - u) * c).astype(out_ref.dtype)


# ---------------------------------------------------------------------------
# One-time parameter preprocessing (hoisted out of the per-step forward)
# ---------------------------------------------------------------------------
def preprocess_ugcgru_params(Wg, bg, Wc, bc, input_dim, num_units,
                             compute_dtype=jnp.float32):
    """De-interleave matrix index, split rows (x vs h) and gate columns (r vs u),
    then pack everything into three stacked operands."""
    Di, U = input_dim, num_units
    Wg = jnp.asarray(Wg)
    Wc = jnp.asarray(Wc)
    bg = jnp.asarray(bg, jnp.float32)
    bc = jnp.asarray(bc, jnp.float32)

    # PyTorch row layout: row = i * num_matrices + m  (m=0 identity, m=1 A-term)
    Wg0, Wg1 = Wg[0::2], Wg[1::2]        # (I, 2U)
    Wc0, Wc1 = Wc[0::2], Wc[1::2]        # (I, U)

    cd = compute_dtype
    wx = jnp.stack([Wg0[:Di, :U], Wg1[:Di, :U],      # r gate
                    Wg0[:Di, U:], Wg1[:Di, U:],      # u gate
                    Wc0[:Di],     Wc1[:Di]],         # candidate
                   axis=0).astype(cd)                # (6, Di, U)
    wh = jnp.stack([Wg0[Di:, :U], Wg1[Di:, :U],
                    Wg0[Di:, U:], Wg1[Di:, U:],
                    Wc0[Di:],     Wc1[Di:]],
                   axis=0).astype(cd)                # (6, U, U)
    b = jnp.stack([bg[:U], bg[U:], bc], axis=0).reshape(3, 1, U)  # f32

    return dict(wx=wx, wh=wh, b=b)


# ---------------------------------------------------------------------------
# Forward wrapper
# ---------------------------------------------------------------------------
def ugcgru_cell_forward(inputs, hx, support, params, num_nodes, num_units):
    """Pallas implementation of UGCGRUCell.forward (is_bnn=False, is_trans=False).

    inputs: (B, N*Di) float32, hx: (B, N*U) float32, support: (N, N)
    params: output of preprocess_ugcgru_params (packed weights).
    returns new_state: (B, N*U) float32
    """
    B = inputs.shape[0]
    N, U = num_nodes, num_units
    Di = inputs.shape[1] // N
    p = params
    cd = p['wx'].dtype                     # compute dtype (f32 or bf16)

    x = inputs.reshape(B, N, Di).astype(cd)
    h = hx.reshape(B, N, U).astype(cd)
    a = support.astype(cd)

    out = pl.pallas_call(
        _fused_ugcgru_kernel,
        out_shape=jax.ShapeDtypeStruct((B, N, U), jnp.float32),
        grid=(B,),
        in_specs=[
            pl.BlockSpec((1, N, Di), lambda b: (b, 0, 0)),   # x
            pl.BlockSpec((1, N, U),  lambda b: (b, 0, 0)),   # h
            pl.BlockSpec((N, N),     lambda b: (0, 0)),      # support (resident)
            pl.BlockSpec((6, Di, U), lambda b: (0, 0, 0)),   # wx stack (resident)
            pl.BlockSpec((6, U, U),  lambda b: (0, 0, 0)),   # wh stack (resident)
            pl.BlockSpec((3, 1, U),  lambda b: (0, 0, 0)),   # bias stack (resident)
        ],
        out_specs=pl.BlockSpec((1, N, U), lambda b: (b, 0, 0)),
        compiler_params=pltpu.CompilerParams(
            dimension_semantics=("parallel",)),
    )(x, h, a, p['wx'], p['wh'], p['b'])

    return out.reshape(B, N * U)


# ---------------------------------------------------------------------------
# Pure-JAX reference (mirrors the PyTorch _gconv / forward exactly)
# ---------------------------------------------------------------------------
def _gconv_ref(inputs, state, support, W, bias, N):
    B = inputs.shape[0]
    x_in = inputs.reshape(B, N, -1)
    st = state.reshape(B, N, -1)
    x = jnp.concatenate([x_in, st], axis=2)         # (B, N, I)
    I = x.shape[2]
    x0 = jnp.transpose(x, (1, 2, 0)).reshape(N, I * B)
    x1 = jnp.dot(support, x0, precision=jax.lax.Precision.HIGHEST)
    xs = jnp.stack([x0, x1], axis=0)                # (2, N, I*B)
    xs = xs.reshape(2, N, I, B).transpose(3, 1, 2, 0).reshape(B * N, I * 2)
    y = jnp.dot(xs, W, precision=jax.lax.Precision.HIGHEST) + bias
    return y.reshape(B, N * W.shape[-1])


def ugcgru_cell_ref(inputs, hx, support, Wg, bg, Wc, bc, N, U):
    B = inputs.shape[0]
    fn = _gconv_ref(inputs, hx, support, Wg, bg, N)          # (B, N*2U)
    value = jax.nn.sigmoid(fn).reshape(B, N, 2 * U)
    r = value[..., :U].reshape(B, N * U)
    u = value[..., U:].reshape(B, N * U)
    c = _gconv_ref(inputs, r * hx, support, Wc, bc, N)
    c = jnp.tanh(c)
    return u * hx + (1.0 - u) * c


# ---------------------------------------------------------------------------
def _scaled_laplacian(adj):
    """Dense equivalent of utils.calculate_scaled_laplacian (lambda_max=None)."""
    N = adj.shape[0]
    d = adj.sum(axis=1)
    d_inv_sqrt = np.where(d > 0, d ** -0.5, 0.0)
    D = np.diag(d_inv_sqrt)
    L = np.eye(N) - D @ adj @ D
    lam_max = float(np.linalg.eigvalsh(L).max())
    return ((2.0 / lam_max) * L - np.eye(N)).astype(np.float32)


if __name__ == "__main__":
    B, N, Di, U = 2, 16, 4, 32            # batch, num_nodes, input_dim, num_units
    I = Di + U

    key = jax.random.PRNGKey(0)
    k_adj, k_wg, k_wc, k_x, k_h = jax.random.split(key, 5)

    # deterministic synthetic adjacency -> scaled Laplacian support
    adj = np.asarray(jax.random.uniform(k_adj, (N, N)), dtype=np.float32)
    adj = adj * (adj > 0.5)
    adj = (adj + adj.T) / 2.0
    np.fill_diagonal(adj, 0.0)
    support = jnp.asarray(_scaled_laplacian(adj))

    # deterministic parameters (xavier-like init; biases per bias_start)
    Wg = (0.1 * jax.random.normal(k_wg, (2 * I, 2 * U))).astype(jnp.float32)
    bg = jnp.full((2 * U,), 1.0, dtype=jnp.float32)     # bias_start=1.0 (gates)
    Wc = (0.1 * jax.random.normal(k_wc, (2 * I, U))).astype(jnp.float32)
    bc = jnp.zeros((U,), dtype=jnp.float32)             # bias_start=0.0 (candidate)

    inputs = jax.random.normal(k_x, (B, N * Di), dtype=jnp.float32)
    hx = jax.random.normal(k_h, (B, N * U), dtype=jnp.float32)

    # one-time weight preprocessing (de-interleave + splits + packing) — outside
    # the per-step RNN forward
    params = preprocess_ugcgru_params(Wg, bg, Wc, bc, Di, U,
                                      compute_dtype=jnp.float32)

    fwd = jax.jit(ugcgru_cell_forward, static_argnums=(4, 5))
    out = fwd(inputs, hx, support, params, N, U)
    out = jax.block_until_ready(out)

    ref = ugcgru_cell_ref(inputs, hx, support, Wg, bg, Wc, bc, N, U)
    np.testing.assert_allclose(np.asarray(out), np.asarray(ref),
                               rtol=1e-3, atol=1e-3)
    print("KERNEL_OK")
</pallas_src>

<mosaic_0001>
module attributes {stable_mosaic.version = 11 : i64} {
  func.func @_fused_ugcgru_kernel(%arg0: i32, %arg1: memref<1x16x4xf32, #tpu.memory_space<vmem>>, %arg2: memref<1x16x32xf32, #tpu.memory_space<vmem>>, %arg3: memref<16x16xf32, #tpu.memory_space<vmem>>, %arg4: memref<6x4x32xf32, #tpu.memory_space<vmem>>, %arg5: memref<6x32x32xf32, #tpu.memory_space<vmem>>, %arg6: memref<3x1x32xf32, #tpu.memory_space<vmem>>, %arg7: memref<1x16x32xf32, #tpu.memory_space<vmem>>) attributes {dimension_semantics = [#tpu.dimension_semantics<parallel>], iteration_bounds = array<i64: 2>, scalar_prefetch = 0 : i64, scratch_operands = 0 : i64, tpu.core_type = #tpu.core_type<tc>, window_params = [{transform_indices = @transform_0, window_bounds = array<i64: 1, 16, 4>}, {transform_indices = @transform_1, window_bounds = array<i64: 1, 16, 32>}, {pipeline_mode = #tpu.pipeline_mode<synchronous>, transform_indices = @transform_2, window_bounds = array<i64: 16, 16>}, {pipeline_mode = #tpu.pipeline_mode<synchronous>, transform_indices = @transform_3, window_bounds = array<i64: 6, 4, 32>}, {pipeline_mode = #tpu.pipeline_mode<synchronous>, transform_indices = @transform_4, window_bounds = array<i64: 6, 32, 32>}, {pipeline_mode = #tpu.pipeline_mode<synchronous>, transform_indices = @transform_5, window_bounds = array<i64: 3, 1, 32>}, {transform_indices = @transform_6, window_bounds = array<i64: 1, 16, 32>}]} {
    %c0 = arith.constant 0 : index
    %c0_0 = arith.constant 0 : index
    %c0_1 = arith.constant 0 : index
    %0 = vector.load %arg1[%c0, %c0_0, %c0_1] : memref<1x16x4xf32, #tpu.memory_space<vmem>>, vector<1x16x4xf32>
    %1 = vector.shape_cast %0 : vector<1x16x4xf32> to vector<16x4xf32>
    %c0_2 = arith.constant 0 : index
    %c0_3 = arith.constant 0 : index
    %c0_4 = arith.constant 0 : index
    %2 = vector.load %arg2[%c0_2, %c0_3, %c0_4] : memref<1x16x32xf32, #tpu.memory_space<vmem>>, vector<1x16x32xf32>
    %3 = vector.shape_cast %2 : vector<1x16x32xf32> to vector<16x32xf32>
    %c0_5 = arith.constant 0 : index
    %c0_6 = arith.constant 0 : index
    %4 = vector.load %arg3[%c0_5, %c0_6] : memref<16x16xf32, #tpu.memory_space<vmem>>, vector<16x16xf32>
    %cst = arith.constant dense<0.000000e+00> : vector<16x4xf32>
    %5 = tpu.matmul %4, %1, %cst {dimension_numbers = #tpu.dot_dimension_numbers<[1], [0], [0], [1], [0, 0, 1, 1], [], []>} : vector<16x16xf32>, vector<16x4xf32>, vector<16x4xf32> -> vector<16x4xf32>
    %cst_7 = arith.constant dense<0.000000e+00> : vector<16x32xf32>
    %6 = tpu.matmul %4, %3, %cst_7 {dimension_numbers = #tpu.dot_dimension_numbers<[1], [0], [0], [1], [0, 0, 1, 1], [], []>} : vector<16x16xf32>, vector<16x32xf32>, vector<16x32xf32> -> vector<16x32xf32>
    %c0_8 = arith.constant 0 : index
    %c0_9 = arith.constant 0 : index
    %c0_10 = arith.constant 0 : index
    %7 = vector.load %arg4[%c0_8, %c0_9, %c0_10] : memref<6x4x32xf32, #tpu.memory_space<vmem>>, vector<1x4x32xf32>
    %8 = vector.shape_cast %7 : vector<1x4x32xf32> to vector<4x32xf32>
    %cst_11 = arith.constant dense<0.000000e+00> : vector<16x32xf32>
    %9 = tpu.matmul %1, %8, %cst_11 {dimension_numbers = #tpu.dot_dimension_numbers<[1], [0], [0], [1], [0, 0, 1, 1], [], []>} : vector<16x4xf32>, vector<4x32xf32>, vector<16x32xf32> -> vector<16x32xf32>
    %c1 = arith.constant 1 : index
    %c0_12 = arith.constant 0 : index
    %c0_13 = arith.constant 0 : index
    %10 = vector.load %arg4[%c1, %c0_12, %c0_13] : memref<6x4x32xf32, #tpu.memory_space<vmem>>, vector<1x4x32xf32>
    %11 = vector.shape_cast %10 : vector<1x4x32xf32> to vector<4x32xf32>
    %cst_14 = arith.constant dense<0.000000e+00> : vector<16x32xf32>
    %12 = tpu.matmul %5, %11, %cst_14 {dimension_numbers = #tpu.dot_dimension_numbers<[1], [0], [0], [1], [0, 0, 1, 1], [], []>} : vector<16x4xf32>, vector<4x32xf32>, vector<16x32xf32> -> vector<16x32xf32>
    %13 = arith.addf %9, %12 : vector<16x32xf32>
    %c0_15 = arith.constant 0 : index
    %c0_16 = arith.constant 0 : index
    %c0_17 = arith.constant 0 : index
    %14 = vector.load %arg5[%c0_15, %c0_16, %c0_17] : memref<6x32x32xf32, #tpu.memory_space<vmem>>, vector<1x32x32xf32>
    %15 = vector.shape_cast %14 : vector<1x32x32xf32> to vector<32x32xf32>
    %cst_18 = arith.constant dense<0.000000e+00> : vector<16x32xf32>
    %16 = tpu.matmul %3, %15, %cst_18 {dimension_numbers = #tpu.dot_dimension_numbers<[1], [0], [0], [1], [0, 0, 1, 1], [], []>} : vector<16x32xf32>, vector<32x32xf32>, vector<16x32xf32> -> vector<16x32xf32>
    %17 = arith.addf %13, %16 : vector<16x32xf32>
    %c1_19 = arith.constant 1 : index
    %c0_20 = arith.constant 0 : index
    %c0_21 = arith.constant 0 : index
    %18 = vector.load %arg5[%c1_19, %c0_20, %c0_21] : memref<6x32x32xf32, #tpu.memory_space<vmem>>, vector<1x32x32xf32>
    %19 = vector.shape_cast %18 : vector<1x32x32xf32> to vector<32x32xf32>
    %cst_22 = arith.constant dense<0.000000e+00> : vector<16x32xf32>
    %20 = tpu.matmul %6, %19, %cst_22 {dimension_numbers = #tpu.dot_dimension_numbers<[1], [0], [0], [1], [0, 0, 1, 1], [], []>} : vector<16x32xf32>, vector<32x32xf32>, vector<16x32xf32> -> vector<16x32xf32>
    %21 = arith.addf %17, %20 : vector<16x32xf32>
    %c0_23 = arith.constant 0 : index
    %c0_24 = arith.constant 0 : index
    %c0_25 = arith.constant 0 : index
    %22 = vector.load %arg6[%c0_23, %c0_24, %c0_25] : memref<3x1x32xf32, #tpu.memory_space<vmem>>, vector<1x1x32xf32>
    %23 = vector.shape_cast %22 : vector<1x1x32xf32> to vector<1x32xf32>
    %24 = vector.broadcast %23 : vector<1x32xf32> to vector<16x32xf32>
    %25 = arith.addf %21, %24 : vector<16x32xf32>
    %26 = arith.negf %25 : vector<16x32xf32>
    %27 = math.exp %26 : vector<16x32xf32>
    %cst_26 = arith.constant 1.000000e+00 : f32
    %28 = vector.broadcast %cst_26 : f32 to vector<16x32xf32>
    %29 = arith.addf %28, %27 : vector<16x32xf32>
    %30 = arith.divf %28, %29 : vector<16x32xf32>
    %c2 = arith.constant 2 : index
    %c0_27 = arith.constant 0 : index
    %c0_28 = arith.constant 0 : index
    %31 = vector.load %arg4[%c2, %c0_27, %c0_28] : memref<6x4x32xf32, #tpu.memory_space<vmem>>, vector<1x4x32xf32>
    %32 = vector.shape_cast %31 : vector<1x4x32xf32> to vector<4x32xf32>
    %cst_29 = arith.constant dense<0.000000e+00> : vector<16x32xf32>
    %33 = tpu.matmul %1, %32, %cst_29 {dimension_numbers = #tpu.dot_dimension_numbers<[1], [0], [0], [1], [0, 0, 1, 1], [], []>} : vector<16x4xf32>, vector<4x32xf32>, vector<16x32xf32> -> vector<16x32xf32>
    %c3 = arith.constant 3 : index
    %c0_30 = arith.constant 0 : index
    %c0_31 = arith.constant 0 : index
    %34 = vector.load %arg4[%c3, %c0_30, %c0_31] : memref<6x4x32xf32, #tpu.memory_space<vmem>>, vector<1x4x32xf32>
    %35 = vector.shape_cast %34 : vector<1x4x32xf32> to vector<4x32xf32>
    %cst_32 = arith.constant dense<0.000000e+00> : vector<16x32xf32>
    %36 = tpu.matmul %5, %35, %cst_32 {dimension_numbers = #tpu.dot_dimension_numbers<[1], [0], [0], [1], [0, 0, 1, 1], [], []>} : vector<16x4xf32>, vector<4x32xf32>, vector<16x32xf32> -> vector<16x32xf32>
    %37 = arith.addf %33, %36 : vector<16x32xf32>
    %c2_33 = arith.constant 2 : index
    %c0_34 = arith.constant 0 : index
    %c0_35 = arith.constant 0 : index
    %38 = vector.load %arg5[%c2_33, %c0_34, %c0_35] : memref<6x32x32xf32, #tpu.memory_space<vmem>>, vector<1x32x32xf32>
    %39 = vector.shape_cast %38 : vector<1x32x32xf32> to vector<32x32xf32>
    %cst_36 = arith.constant dense<0.000000e+00> : vector<16x32xf32>
    %40 = tpu.matmul %3, %39, %cst_36 {dimension_numbers = #tpu.dot_dimension_numbers<[1], [0], [0], [1], [0, 0, 1, 1], [], []>} : vector<16x32xf32>, vector<32x32xf32>, vector<16x32xf32> -> vector<16x32xf32>
    %41 = arith.addf %37, %40 : vector<16x32xf32>
    %c3_37 = arith.constant 3 : index
    %c0_38 = arith.constant 0 : index
    %c0_39 = arith.constant 0 : index
    %42 = vector.load %arg5[%c3_37, %c0_38, %c0_39] : memref<6x32x32xf32, #tpu.memory_space<vmem>>, vector<1x32x32xf32>
    %43 = vector.shape_cast %42 : vector<1x32x32xf32> to vector<32x32xf32>
    %cst_40 = arith.constant dense<0.000000e+00> : vector<16x32xf32>
    %44 = tpu.matmul %6, %43, %cst_40 {dimension_numbers = #tpu.dot_dimension_numbers<[1], [0], [0], [1], [0, 0, 1, 1], [], []>} : vector<16x32xf32>, vector<32x32xf32>, vector<16x32xf32> -> vector<16x32xf32>
    %45 = arith.addf %41, %44 : vector<16x32xf32>
    %c1_41 = arith.constant 1 : index
    %c0_42 = arith.constant 0 : index
    %c0_43 = arith.constant 0 : index
    %46 = vector.load %arg6[%c1_41, %c0_42, %c0_43] : memref<3x1x32xf32, #tpu.memory_space<vmem>>, vector<1x1x32xf32>
    %47 = vector.shape_cast %46 : vector<1x1x32xf32> to vector<1x32xf32>
    %48 = vector.broadcast %47 : vector<1x32xf32> to vector<16x32xf32>
    %49 = arith.addf %45, %48 : vector<16x32xf32>
    %50 = arith.negf %49 : vector<16x32xf32>
    %51 = math.exp %50 : vector<16x32xf32>
    %cst_44 = arith.constant 1.000000e+00 : f32
    %52 = vector.broadcast %cst_44 : f32 to vector<16x32xf32>
    %53 = arith.addf %52, %51 : vector<16x32xf32>
    %54 = arith.divf %52, %53 : vector<16x32xf32>
    %55 = arith.mulf %30, %3 : vector<16x32xf32>
    %cst_45 = arith.constant dense<0.000000e+00> : vector<16x32xf32>
    %56 = tpu.matmul %4, %55, %cst_45 {dimension_numbers = #tpu.dot_dimension_numbers<[1], [0], [0], [1], [0, 0, 1, 1], [], []>} : vector<16x16xf32>, vector<16x32xf32>, vector<16x32xf32> -> vector<16x32xf32>
    %c4 = arith.constant 4 : index
    %c0_46 = arith.constant 0 : index
    %c0_47 = arith.constant 0 : index
    %57 = vector.load %arg4[%c4, %c0_46, %c0_47] : memref<6x4x32xf32, #tpu.memory_space<vmem>>, vector<1x4x32xf32>
    %58 = vector.shape_cast %57 : vector<1x4x32xf32> to vector<4x32xf32>
    %cst_48 = arith.constant dense<0.000000e+00> : vector<16x32xf32>
    %59 = tpu.matmul %1, %58, %cst_48 {dimension_numbers = #tpu.dot_dimension_numbers<[1], [0], [0], [1], [0, 0, 1, 1], [], []>} : vector<16x4xf32>, vector<4x32xf32>, vector<16x32xf32> -> vector<16x32xf32>
    %c5 = arith.constant 5 : index
    %c0_49 = arith.constant 0 : index
    %c0_50 = arith.constant 0 : index
    %60 = vector.load %arg4[%c5, %c0_49, %c0_50] : memref<6x4x32xf32, #tpu.memory_space<vmem>>, vector<1x4x32xf32>
    %61 = vector.shape_cast %60 : vector<1x4x32xf32> to vector<4x32xf32>
    %cst_51 = arith.constant dense<0.000000e+00> : vector<16x32xf32>
    %62 = tpu.matmul %5, %61, %cst_51 {dimension_numbers = #tpu.dot_dimension_numbers<[1], [0], [0], [1], [0, 0, 1, 1], [], []>} : vector<16x4xf32>, vector<4x32xf32>, vector<16x32xf32> -> vector<16x32xf32>
    %63 = arith.addf %59, %62 : vector<16x32xf32>
    %c4_52 = arith.constant 4 : index
    %c0_53 = arith.constant 0 : index
    %c0_54 = arith.constant 0 : index
    %64 = vector.load %arg5[%c4_52, %c0_53, %c0_54] : memref<6x32x32xf32, #tpu.memory_space<vmem>>, vector<1x32x32xf32>
    %65 = vector.shape_cast %64 : vector<1x32x32xf32> to vector<32x32xf32>
    %cst_55 = arith.constant dense<0.000000e+00> : vector<16x32xf32>
    %66 = tpu.matmul %55, %65, %cst_55 {dimension_numbers = #tpu.dot_dimension_numbers<[1], [0], [0], [1], [0, 0, 1, 1], [], []>} : vector<16x32xf32>, vector<32x32xf32>, vector<16x32xf32> -> vector<16x32xf32>
    %67 = arith.addf %63, %66 : vector<16x32xf32>
    %c5_56 = arith.constant 5 : index
    %c0_57 = arith.constant 0 : index
    %c0_58 = arith.constant 0 : index
    %68 = vector.load %arg5[%c5_56, %c0_57, %c0_58] : memref<6x32x32xf32, #tpu.memory_space<vmem>>, vector<1x32x32xf32>
    %69 = vector.shape_cast %68 : vector<1x32x32xf32> to vector<32x32xf32>
    %cst_59 = arith.constant dense<0.000000e+00> : vector<16x32xf32>
    %70 = tpu.matmul %56, %69, %cst_59 {dimension_numbers = #tpu.dot_dimension_numbers<[1], [0], [0], [1], [0, 0, 1, 1], [], []>} : vector<16x32xf32>, vector<32x32xf32>, vector<16x32xf32> -> vector<16x32xf32>
    %71 = arith.addf %67, %70 : vector<16x32xf32>
    %c2_60 = arith.constant 2 : index
    %c0_61 = arith.constant 0 : index
    %c0_62 = arith.constant 0 : index
    %72 = vector.load %arg6[%c2_60, %c0_61, %c0_62] : memref<3x1x32xf32, #tpu.memory_space<vmem>>, vector<1x1x32xf32>
    %73 = vector.shape_cast %72 : vector<1x1x32xf32> to vector<1x32xf32>
    %74 = vector.broadcast %73 : vector<1x32xf32> to vector<16x32xf32>
    %75 = arith.addf %71, %74 : vector<16x32xf32>
    %76 = math.tanh %75 : vector<16x32xf32>
    %77 = arith.mulf %54, %3 : vector<16x32xf32>
    %cst_63 = arith.constant 1.000000e+00 : f32
    %78 = vector.broadcast %cst_63 : f32 to vector<16x32xf32>
    %79 = arith.subf %78, %54 : vector<16x32xf32>
    %80 = arith.mulf %79, %76 : vector<16x32xf32>
    %81 = arith.addf %77, %80 : vector<16x32xf32>
    %c0_64 = arith.constant 0 : index
    %c0_65 = arith.constant 0 : index
    %c0_66 = arith.constant 0 : index
    %82 = vector.load %arg7[%c0_64, %c0_65, %c0_66] : memref<1x16x32xf32, #tpu.memory_space<vmem>>, vector<1x16x32xf32>
    %83 = vector.shape_cast %82 : vector<1x16x32xf32> to vector<16x32xf32>
    %84 = vector.shape_cast %81 : vector<16x32xf32> to vector<1x16x32xf32>
    tpu.vector_store %arg7[%c0_64, %c0_65, %c0_66], %84 {strides = array<i32>} : memref<1x16x32xf32, #tpu.memory_space<vmem>>, vector<1x16x32xf32>,
    return
  }
  func.func @transform_0(%arg0: i32) -> (i32, i32, i32) {
    %c0_i32 = arith.constant 0 : i32
    %c0_i32_0 = arith.constant 0 : i32
    %c0_i32_1 = arith.constant 0 : i32
    return %arg0, %c0_i32, %c0_i32_0 : i32, i32, i32
  }
  func.func @transform_1(%arg0: i32) -> (i32, i32, i32) {
    %c0_i32 = arith.constant 0 : i32
    %c0_i32_0 = arith.constant 0 : i32
    %c0_i32_1 = arith.constant 0 : i32
    return %arg0, %c0_i32, %c0_i32_0 : i32, i32, i32
  }
  func.func @transform_2(%arg0: i32) -> (i32, i32) {
    %c0_i32 = arith.constant 0 : i32
    %c0_i32_0 = arith.constant 0 : i32
    %c0_i32_1 = arith.constant 0 : i32
    return %c0_i32, %c0_i32_0 : i32, i32
  }
  func.func @transform_3(%arg0: i32) -> (i32, i32, i32) {
    %c0_i32 = arith.constant 0 : i32
    %c0_i32_0 = arith.constant 0 : i32
    %c0_i32_1 = arith.constant 0 : i32
    %c0_i32_2 = arith.constant 0 : i32
    return %c0_i32, %c0_i32_0, %c0_i32_1 : i32, i32, i32
  }
  func.func @transform_4(%arg0: i32) -> (i32, i32, i32) {
    %c0_i32 = arith.constant 0 : i32
    %c0_i32_0 = arith.constant 0 : i32
    %c0_i32_1 = arith.constant 0 : i32
    %c0_i32_2 = arith.constant 0 : i32
    return %c0_i32, %c0_i32_0, %c0_i32_1 : i32, i32, i32
  }
  func.func @transform_5(%arg0: i32) -> (i32, i32, i32) {
    %c0_i32 = arith.constant 0 : i32
    %c0_i32_0 = arith.constant 0 : i32
    %c0_i32_1 = arith.constant 0 : i32
    %c0_i32_2 = arith.constant 0 : i32
    return %c0_i32, %c0_i32_0, %c0_i32_1 : i32, i32, i32
  }
  func.func @transform_6(%arg0: i32) -> (i32, i32, i32) {
    %c0_i32 = arith.constant 0 : i32
    %c0_i32_0 = arith.constant 0 : i32
    %c0_i32_1 = arith.constant 0 : i32
    return %arg0, %c0_i32, %c0_i32_0 : i32, i32, i32
  }
}

</mosaic_0001>

<llo_original>
// kernel: ugcgru_cell_forward.1
$region0: #{ugcgru_cell_forward.1}
  #allocation0 [shape = 'u32[]', space=smem, size = 0x4, offset = 0x4, fixed_abs, tag = 'smem constant byte address 0x4 - core index']
  #allocation1 [shape = 'u32[144,128]{1,0:T(1,128)}', space=vmem, size = 0x12000, scoped, tag = 'internal scratch']
  %s0 = inlined_call_operand.vmem [shape: f32[2,16,4], index: 0, kind: input, shape index: {}]
  %s1 = inlined_call_operand.vmem [shape: f32[2,16,32], index: 1, kind: input, shape index: {}]
  %s2 = inlined_call_operand.vmem [shape: f32[16,16], index: 2, kind: input, shape index: {}]
  %s3 = inlined_call_operand.vmem [shape: f32[6,4,32], index: 3, kind: input, shape index: {}]
  %s4 = inlined_call_operand.hbm [shape: f32[6,32,32], index: 4, kind: input, shape index: {}]
  %s5 = inlined_call_operand.vmem [shape: f32[3,1,32], index: 5, kind: input, shape index: {}]
  %s6 = inlined_call_operand.vmem [shape: f32[2,16,32], index: 6, kind: output, shape index: {}]
  %s7 = sld [smem:[#allocation0]]
  $region61: #{ugcgru_cell_forward.1} parent=0
    _
  %s9 = ssub.s32 1, %s7
  %s10 = scalar_select 0, %s9, %s7
  $region1: #{ugcgru_cell_forward.1} parent=0
    #allocation2 [shape = 'u8[98304]{0}', space=vmem, size = 0x18000, scoped, tag = 'input window, operand 4, single buffered']
    #allocation3 [shape = 's32[2]{0}', space=sflag, size = 0x8, scoped, tag = 'scoped memory for ugcgru_cell_forward.1']
    %11 = vsyncpa [#allocation3], 0
    loop: start=0, step=1, limit=4
    $region2: #{ugcgru_cell_forward.1} parent=1 // loop_pre_header
      _
    $region3: #{ugcgru_cell_forward.1} parent=1 // loop_header
      %s13 = sphi 0, %s17
      %p14 = scmp.ge.s32.totalorder %s13, 4
      %s23 = sphi 0, %s25
      %s26 = sphi 0, %s23
      %s27 = sphi 0, %s26
      %s43 = sphi 0, %s27
      %s49 = sphi 0, %s51
      %s52 = sphi 0, %s49
      %s53 = sphi 0, %s52
      %s69 = sphi 0, %s53
      %s73 = sphi 0, %s73
      %s75 = sphi 0, %s73
      %s76 = sphi 0, %s75
      %s90 = sphi 0, %s76
      %s94 = sphi 0, %s94
      %s96 = sphi 0, %s94
      %s97 = sphi 0, %s96
      %s111 = sphi 0, %s97
      %s115 = sphi 0, %s115
      %s117 = sphi 0, %s115
      %s118 = sphi 0, %s117
      %s132 = sphi 0, %s118
      %s136 = sphi 0, %s136
      %s138 = sphi 0, %s136
      %s139 = sphi 0, %s138
      %s153 = sphi 0, %s139
      %s159 = sphi 0, %s161
      %s162 = sphi 0, %s159
      %s163 = sphi 0, %s162
      %s179 = sphi 0, %s163
    $region4: #{ugcgru_cell_forward.1} parent=1 // loop_header_branch
      %16 = sbr.rel (%p14) target = $region8
    $region5: #{ugcgru_cell_forward.1} parent=1 // loop_body
      %s18 = ssub.s32 %s13, 1
      %s19 = ssub.s32 %s13, 2
      %s20 = sadd.s32 %s13, 1
      %s21 = ssub.s32 %s13, %s20
      %p22 = scmp.eq.s32.totalorder %s21, 0
      %s24 = sadd.s32 %s23, 1
      %s25 = scalar_select %p22, %s23, %s24
      %p28 = pneg %p22
      %p29 = scmp.eq.s32.totalorder %s13, 1
      %p30 = por %p28, %p29
      %p31 = scmp.ne.s32.totalorder %s23, %s26
      %p32 = scmp.eq.s32.totalorder %s13, 0
      %p33 = por %p31, %p32
      %p34 = scmp.ne.s32.totalorder %s23, %s26
      %p35 = scmp.eq.s32.totalorder %s18, 1
      %p36 = por %p34, %p35
      %p37 = scmp.ne.s32.totalorder %s26, %s27
      %p38 = scmp.eq.s32.totalorder %s18, 0
      %p39 = por %p37, %p38
      %p40 = scmp.ne.s32.totalorder %s26, %s27
      %p41 = scmp.eq.s32.totalorder %s19, 1
      %p42 = por %p40, %p41
      %p44 = scmp.ne.s32.totalorder %s27, %s43
      %p45 = scmp.eq.s32.totalorder %s19, 0
      %p46 = por %p44, %p45
      %s47 = ssub.s32 %s13, %s20
      %p48 = scmp.eq.s32.totalorder %s47, 0
      %s50 = sadd.s32 %s49, 1
      %s51 = scalar_select %p48, %s49, %s50
      %p54 = pneg %p48
      %p55 = scmp.eq.s32.totalorder %s13, 1
      %p56 = por %p54, %p55
      %p57 = scmp.ne.s32.totalorder %s49, %s52
      %p58 = scmp.eq.s32.totalorder %s13, 0
      %p59 = por %p57, %p58
      %p60 = scmp.ne.s32.totalorder %s49, %s52
      %p61 = scmp.eq.s32.totalorder %s18, 1
      %p62 = por %p60, %p61
      %p63 = scmp.ne.s32.totalorder %s52, %s53
      %p64 = scmp.eq.s32.totalorder %s18, 0
      %p65 = por %p63, %p64
      %p66 = scmp.ne.s32.totalorder %s52, %s53
      %p67 = scmp.eq.s32.totalorder %s19, 1
      %p68 = por %p66, %p67
      %p70 = scmp.ne.s32.totalorder %s53, %s69
      %p71 = scmp.eq.s32.totalorder %s19, 0
      %p72 = por %p70, %p71
      %s74 = sadd.s32 %s73, 1
      %p77 = scmp.eq.s32.totalorder %s13, 1
      %p78 = scmp.ne.s32.totalorder %s73, %s75
      %p79 = scmp.eq.s32.totalorder %s13, 0
      %p80 = por %p78, %p79
      %p81 = scmp.ne.s32.totalorder %s73, %s75
      %p82 = scmp.eq.s32.totalorder %s18, 1
      %p83 = por %p81, %p82
      %p84 = scmp.ne.s32.totalorder %s75, %s76
      %p85 = scmp.eq.s32.totalorder %s18, 0
      %p86 = por %p84, %p85
      %p87 = scmp.ne.s32.totalorder %s75, %s76
      %p88 = scmp.eq.s32.totalorder %s19, 1
      %p89 = por %p87, %p88
      %p91 = scmp.ne.s32.totalorder %s76, %s90
      %p92 = scmp.eq.s32.totalorder %s19, 0
      %p93 = por %p91, %p92
      %s95 = sadd.s32 %s94, 1
      %p98 = scmp.eq.s32.totalorder %s13, 1
      %p99 = scmp.ne.s32.totalorder %s94, %s96
      %p100 = scmp.eq.s32.totalorder %s13, 0
      %p101 = por %p99, %p100
      %p102 = scmp.ne.s32.totalorder %s94, %s96
      %p103 = scmp.eq.s32.totalorder %s18, 1
      %p104 = por %p102, %p103
      %p105 = scmp.ne.s32.totalorder %s96, %s97
      %p106 = scmp.eq.s32.totalorder %s18, 0
      %p107 = por %p105, %p106
      %p108 = scmp.ne.s32.totalorder %s96, %s97
      %p109 = scmp.eq.s32.totalorder %s19, 1
      %p110 = por %p108, %p109
      %p112 = scmp.ne.s32.totalorder %s97, %s111
      %p113 = scmp.eq.s32.totalorder %s19, 0
      %p114 = por %p112, %p113
      %s116 = sadd.s32 %s115, 1
      %p119 = scmp.eq.s32.totalorder %s13, 1
      %p120 = scmp.ne.s32.totalorder %s115, %s117
      %p121 = scmp.eq.s32.totalorder %s13, 0
      %p122 = por %p120, %p121
      %p123 = scmp.ne.s32.totalorder %s115, %s117
      %p124 = scmp.eq.s32.totalorder %s18, 1
      %p125 = por %p123, %p124
      %p126 = scmp.ne.s32.totalorder %s117, %s118
      %p127 = scmp.eq.s32.totalorder %s18, 0
      %p128 = por %p126, %p127
      %p129 = scmp.ne.s32.totalorder %s117, %s118
      %p130 = scmp.eq.s32.totalorder %s19, 1
      %p131 = por %p129, %p130
      %p133 = scmp.ne.s32.totalorder %s118, %s132
      %p134 = scmp.eq.s32.totalorder %s19, 0
      %p135 = por %p133, %p134
      %s137 = sadd.s32 %s136, 1
      %p140 = scmp.eq.s32.totalorder %s13, 1
      %p141 = scmp.ne.s32.totalorder %s136, %s138
      %p142 = scmp.eq.s32.totalorder %s13, 0
      %p143 = por %p141, %p142
      %p144 = scmp.ne.s32.totalorder %s136, %s138
      %p145 = scmp.eq.s32.totalorder %s18, 1
      %p146 = por %p144, %p145
      %p147 = scmp.ne.s32.totalorder %s138, %s139
      %p148 = scmp.eq.s32.totalorder %s18, 0
      %p149 = por %p147, %p148
      %p150 = scmp.ne.s32.totalorder %s138, %s139
      %p151 = scmp.eq.s32.totalorder %s19, 1
      %p152 = por %p150, %p151
      %p154 = scmp.ne.s32.totalorder %s139, %s153
      %p155 = scmp.eq.s32.totalorder %s19, 0
      %p156 = por %p154, %p155
      %s157 = ssub.s32 %s13, %s20
      %p158 = scmp.eq.s32.totalorder %s157, 0
      %s160 = sadd.s32 %s159, 1
      %s161 = scalar_select %p158, %s159, %s160
      %p164 = pneg %p158
      %p165 = scmp.eq.s32.totalorder %s13, 1
      %p166 = por %p164, %p165
      %p167 = scmp.ne.s32.totalorder %s159, %s162
      %p168 = scmp.eq.s32.totalorder %s13, 0
      %p169 = por %p167, %p168
      %p170 = scmp.ne.s32.totalorder %s159, %s162
      %p171 = scmp.eq.s32.totalorder %s18, 1
      %p172 = por %p170, %p171
      %p173 = scmp.ne.s32.totalorder %s162, %s163
      %p174 = scmp.eq.s32.totalorder %s18, 0
      %p175 = por %p173, %p174
      %p176 = scmp.ne.s32.totalorder %s162, %s163
      %p177 = scmp.eq.s32.totalorder %s19, 1
      %p178 = por %p176, %p177
      %p180 = scmp.ne.s32.totalorder %s163, %s179
      %p181 = scmp.eq.s32.totalorder %s19, 0
      %p182 = por %p180, %p181
      %p183 = scmp.le.s32.totalorder 1, %s13
      %p184 = scmp.lt.s32.totalorder %s13, 3
      %p185 = pnand %p183, %p184
      %p186 = pneg %p185
      // Predicated region
      $region9: #{ugcgru_cell_forward.1} parent=5 // pred_check
        _
      $region10: #{ugcgru_cell_forward.1} parent=5 // pred_check_branch
        %188 = sbr.rel (%p185) target = $region12
      $region11: #{ugcgru_cell_forward.1} parent=5 // pred_region
        %s189 = ssub.s32 %s13, 1
        // Predicated region
        $region13: #{ugcgru_cell_forward.1} parent=11 // pred_check
          %p190 = pneg %p86
        $region14: #{ugcgru_cell_forward.1} parent=11 // pred_check_branch
          %192 = sbr.rel (%p190) target = $region16
        $region15: #{ugcgru_cell_forward.1} parent=11 // pred_region
          _
        $region16: #{ugcgru_cell_forward.1} parent=11 // pred_fallthru
          _
        // Predicated region
        $region17: #{ugcgru_cell_forward.1} parent=11 // pred_check
          %p193 = pneg %p107
        $region18: #{ugcgru_cell_forward.1} parent=11 // pred_check_branch
          %195 = sbr.rel (%p193) target = $region20
        $region19: #{ugcgru_cell_forward.1} parent=11 // pred_region
          _
        $region20: #{ugcgru_cell_forward.1} parent=11 // pred_fallthru
          _
        // Predicated region
        $region21: #{ugcgru_cell_forward.1} parent=11 // pred_check
          %p196 = pneg %p128
        $region22: #{ugcgru_cell_forward.1} parent=11 // pred_check_branch
          %198 = sbr.rel (%p196) target = $region24
        $region23: #{ugcgru_cell_forward.1} parent=11 // pred_region
          %s200 = ssub.s32 3072, 3072
          %201 = vsyncadd [#allocation3], %s200
          %s202 = sshll.u32 [#allocation2], 4
          %s203 = int_to_ptr.vmem [resolvable:$true] %s202
          %208 = dma.hbm_to_vmem [thread:$0]  %s4, 3072, %s203, [#allocation3], 128, 128, 8
        $region24: #{ugcgru_cell_forward.1} parent=11 // pred_fallthru
          _
        // Predicated region
        $region25: #{ugcgru_cell_forward.1} parent=11 // pred_check
          %p209 = pneg %p149
        $region26: #{ugcgru_cell_forward.1} parent=11 // pred_check_branch
          %211 = sbr.rel (%p209) target = $region28
        $region27: #{ugcgru_cell_forward.1} parent=11 // pred_region
          _
        $region28: #{ugcgru_cell_forward.1} parent=11 // pred_fallthru
          _
      $region12: #{ugcgru_cell_forward.1} parent=5 // pred_fallthru
        _
      %p212 = scmp.lt.s32.totalorder %s13, 2
      // Predicated region
      $region29: #{ugcgru_cell_forward.1} parent=5 // pred_check
        %p213 = pneg %p212
      $region30: #{ugcgru_cell_forward.1} parent=5 // pred_check_branch
        %215 = sbr.rel (%p213) target = $region32
      $region31: #{ugcgru_cell_forward.1} parent=5 // pred_region
        // Predicated region
        $region33: #{ugcgru_cell_forward.1} parent=31 // pred_check
          %p216 = pneg %p33
        $region34: #{ugcgru_cell_forward.1} parent=31 // pred_check_branch
          %218 = sbr.rel (%p216) target = $region36
        $region35: #{ugcgru_cell_forward.1} parent=31 // pred_region
          %p219 = scmp.lt.s32.totalorder %s13, 1
          %s220 = scalar_select %p219, %s13, 1
          %s221 = smul.addr %s220, 2
          %s222 = smul.addr %s221, 8
          %s223 = scalar_lea.vmem %s0, %s222
        $region36: #{ugcgru_cell_forward.1} parent=31 // pred_fallthru
          _
        // Predicated region
        $region37: #{ugcgru_cell_forward.1} parent=31 // pred_check
          %p224 = pneg %p59
        $region38: #{ugcgru_cell_forward.1} parent=31 // pred_check_branch
          %226 = sbr.rel (%p224) target = $region40
        $region39: #{ugcgru_cell_forward.1} parent=31 // pred_region
          %p227 = scmp.lt.s32.totalorder %s13, 1
          %s228 = scalar_select %p227, %s13, 1
          %s229 = smul.addr %s228, 2
          %s230 = smul.addr %s229, 8
          %s231 = scalar_lea.vmem %s1, %s230
        $region40: #{ugcgru_cell_forward.1} parent=31 // pred_fallthru
          _
      $region32: #{ugcgru_cell_forward.1} parent=5 // pred_fallthru
        _
      %p232 = scmp.le.s32.totalorder 1, %s13
      %p233 = scmp.lt.s32.totalorder %s13, 3
      %p234 = pnand %p232, %p233
      %p235 = pneg %p234
      // Predicated region
      $region41: #{ugcgru_cell_forward.1} parent=5 // pred_check
        _
      $region42: #{ugcgru_cell_forward.1} parent=5 // pred_check_branch
        %237 = sbr.rel (%p234) target = $region44
      $region43: #{ugcgru_cell_forward.1} parent=5 // pred_region
        %s238 = ssub.s32 %s13, 1
        // Predicated region
        $region45: #{ugcgru_cell_forward.1} parent=43 // pred_check
          %p239 = pneg %p128
        $region46: #{ugcgru_cell_forward.1} parent=43 // pred_check_branch
          %241 = sbr.rel (%p239) target = $region48
        $region47: #{ugcgru_cell_forward.1} parent=43 // pred_region
          %242 = dma.done [#allocation3], 3072
        $region48: #{ugcgru_cell_forward.1} parent=43 // pred_fallthru
          _
        %p243 = scmp.lt.s32.totalorder %s18, 1
        %s244 = scalar_select %p243, %s18, 1
        %s245 = smul.addr %s244, 2
        %s246 = smul.addr %s245, 8
        %s247 = scalar_lea.vmem %s0, %s246
        %p248 = pneg %p39
        %p249 = pneg %p36
        %p250 = scmp.lt.s32.totalorder %s18, 1
        %s251 = scalar_select %p250, %s18, 1
        %s252 = smul.addr %s251, 2
        %s253 = smul.addr %s252, 8
        %s254 = scalar_lea.vmem %s1, %s253
        %p255 = pneg %p65
        %p256 = pneg %p62
        %p257 = pneg %p86
        %p258 = pneg %p83
        %p259 = pneg %p107
        %p260 = pneg %p104
        %p261 = pneg %p128
        %p262 = pneg %p125
        %p263 = pneg %p149
        %p264 = pneg %p146
        %p265 = pneg %p175
        %p266 = pneg %p172
        %p267 = scmp.lt.s32.totalorder %s18, 1
        %s268 = scalar_select %p267, %s18, 1
        %s269 = smul.addr %s268, 2
        %s270 = smul.addr %s269, 8
        %s271 = scalar_lea.vmem %s6, %s270
        %p272 = scmp.lt.s32.totalorder %s18, 1
        %s273 = scalar_select %p272, %s18, 1
        %s274 = smul.addr %s273, 2
        %s275 = smul.addr %s274, 8
        %s276 = scalar_lea.vmem %s0, %s275
        %p277 = scmp.lt.s32.totalorder %s18, 1
        %s278 = scalar_select %p277, %s18, 1
        %s279 = smul.addr %s278, 2
        %s280 = smul.addr %s279, 8
        %s281 = scalar_lea.vmem %s1, %s280
        %p282 = scmp.lt.s32.totalorder %s18, 1
        %s283 = scalar_select %p282, %s18, 1
        %s284 = smul.addr %s283, 2
        %s285 = smul.addr %s284, 8
        %s286 = scalar_lea.vmem %s6, %s285
        %v287 = vld [vmem:[%s276] sm:$0xff]
        %v288 = vld [vmem:[%s276 + $0x8] sm:$0xff]
        %v289 = vld [vmem:[%s281] sm:$0xff]
        %v290 = vld [vmem:[%s281 + $0x8] sm:$0xff]
        %v291 = vld [vmem:[%s2] sm:$0xff]
        %v292 = vld [vmem:[%s2 + $0x8] sm:$0xff]
        %vm293 = vcmask 130048
        %v295 = vsel %vm293, %v291, 0
        %v298 = vsel %vm293, %v292, 0
        %300 = vmatprep.subr.mxu0 0.0
        %301 = vmatpush1.msra.mxu0 %v287
        %302 = vmatprep.subr.mxu0 0.0
        %303 = vmatpush1.msra.mxu0 %v288
        %304 = vmatprep.subr.mxu0 0.0
        %305 = vmatpush1.msra.mxu0 0.0
        %306 = vmatprep.subr.mxu0 0.0
        %307 = vmatpush1.msra.mxu0 0.0
        %308 = vmatprep.subr.mxu0 0.0
        %309 = vmatpush1.msra.mxu0 0.0
        %310 = vmatprep.subr.mxu0 0.0
        %311 = vmatpush1.msra.mxu0 0.0
        %312 = vmatprep.subr.mxu0 0.0
        %313 = vmatpush1.msra.mxu0 0.0
        %314 = vmatprep.subr.mxu0 0.0
        %315 = vmatpush1.msra.mxu0 0.0
        %316 = vmatprep.subr.mxu0 0.0
        %317 = vmatpush1.msra.mxu0 0.0
        %318 = vmatprep.subr.mxu0 0.0
        %319 = vmatpush1.msra.mxu0 0.0
        %320 = vmatprep.subr.mxu0 0.0
        %321 = vmatpush1.msra.mxu0 0.0
        %322 = vmatprep.subr.mxu0 0.0
        %323 = vmatpush1.msra.mxu0 0.0
        %324 = vmatprep.subr.mxu0 0.0
        %325 = vmatpush1.msra.mxu0 0.0
        %326 = vmatprep.subr.mxu0 0.0
        %327 = vmatpush1.msra.mxu0 0.0
        %328 = vmatprep.subr.mxu0 0.0
        %329 = vmatpush1.msra.mxu0 0.0
        %330 = vmatprep.subr.mxu0 0.0
        %331 = vmatpush1.msra.mxu0 0.0
        %332 = vmatprep.subr.mxu0 0.0
        %333 = vmatpush1.msra.mxu0 0.0
        %334 = vmatprep.subr.mxu0 0.0
        %335 = vmatpush1.msra.mxu0 0.0
        %336 = vmatprep.subr.mxu0 0.0
        %337 = vmatpush1.msra.mxu0 0.0
        %338 = vmatprep.subr.mxu0 0.0
        %339 = vmatpush1.msra.mxu0 0.0
        %340 = vmatprep.subr.mxu0 0.0
        %341 = vmatpush1.msra.mxu0 0.0
        %342 = vmatprep.subr.mxu0 0.0
        %343 = vmatpush1.msra.mxu0 0.0
        %344 = vmatprep.subr.mxu0 0.0
        %345 = vmatpush1.msra.mxu0 0.0
        %346 = vmatprep.subr.mxu0 0.0
        %347 = vmatpush1.msra.mxu0 0.0
        %348 = vmatprep.subr.mxu0 0.0
        %349 = vmatpush1.msra.mxu0 0.0
        %350 = vmatprep.subr.mxu0 0.0
        %351 = vmatpush1.msra.mxu0 0.0
        %352 = vmatprep.subr.mxu0 0.0
        %353 = vmatpush1.msra.mxu0 0.0
        %354 = vmatprep.subr.mxu0 0.0
        %355 = vmatpush1.msra.mxu0 0.0
        %356 = vmatprep.subr.mxu0 0.0
        %357 = vmatpush1.msra.mxu0 0.0
        %358 = vmatprep.subr.mxu0 0.0
        %359 = vmatpush1.msra.mxu0 0.0
        %360 = vmatprep.subr.mxu0 0.0
        %361 = vmatpush1.msra.mxu0 0.0
        %362 = vmatprep.subr.mxu0 0.0
        %363 = vmatpush1.msra.mxu0 0.0
        %364 = vmatprep.mubr.f32.mxu0 0.0
        %365 = vmatmul.mubr.f32.gmra.mrb[0].mxu0 %v295
        %v366 = vpop.f32.mrb[0].mxu0
        %v367 = vadd.f32 0.0, %v366
        %v368 = vpop.f32.mrb[0].mxu0
        %369 = vmatprep.mubr.f32.mxu0 0.0
        %370 = vmatmul.mubr.f32.gmra.mrb[0].mxu0 %v298
        %v371 = vpop.f32.mrb[0].mxu0
        %v372 = vadd.f32 0.0, %v371
        %v373 = vpop.f32.mrb[0].mxu0
        %374 = vdwg.mxu0
        %375 = vmatprep.subr.mxu0 0.0
        %376 = vmatpush1.msra.mxu0 %v289
        %377 = vmatprep.subr.mxu0 0.0
        %378 = vmatpush1.msra.mxu0 %v290
        %379 = vmatprep.subr.mxu0 0.0
        %380 = vmatpush1.msra.mxu0 0.0
        %381 = vmatprep.subr.mxu0 0.0
        %382 = vmatpush1.msra.mxu0 0.0
        %383 = vmatprep.subr.mxu0 0.0
        %384 = vmatpush1.msra.mxu0 0.0
        %385 = vmatprep.subr.mxu0 0.0
        %386 = vmatpush1.msra.mxu0 0.0
        %387 = vmatprep.subr.mxu0 0.0
        %388 = vmatpush1.msra.mxu0 0.0
        %389 = vmatprep.subr.mxu0 0.0
        %390 = vmatpush1.msra.mxu0 0.0
        %391 = vmatprep.subr.mxu0 0.0
        %392 = vmatpush1.msra.mxu0 0.0
        %393 = vmatprep.subr.mxu0 0.0
        %394 = vmatpush1.msra.mxu0 0.0
        %395 = vmatprep.subr.mxu0 0.0
        %396 = vmatpush1.msra.mxu0 0.0
        %397 = vmatprep.subr.mxu0 0.0
        %398 = vmatpush1.msra.mxu0 0.0
        %399 = vmatprep.subr.mxu0 0.0
        %400 = vmatpush1.msra.mxu0 0.0
        %401 = vmatprep.subr.mxu0 0.0
        %402 = vmatpush1.msra.mxu0 0.0
        %403 = vmatprep.subr.mxu0 0.0
        %404 = vmatpush1.msra.mxu0 0.0
        %405 = vmatprep.subr.mxu0 0.0
        %406 = vmatpush1.msra.mxu0 0.0
        %407 = vmatprep.subr.mxu0 0.0
        %408 = vmatpush1.msra.mxu0 0.0
        %409 = vmatprep.subr.mxu0 0.0
        %410 = vmatpush1.msra.mxu0 0.0
        %411 = vmatprep.subr.mxu0 0.0
        %412 = vmatpush1.msra.mxu0 0.0
        %413 = vmatprep.subr.mxu0 0.0
        %414 = vmatpush1.msra.mxu0 0.0
        %415 = vmatprep.subr.mxu0 0.0
        %416 = vmatpush1.msra.mxu0 0.0
        %417 = vmatprep.subr.mxu0 0.0
        %418 = vmatpush1.msra.mxu0 0.0
        %419 = vmatprep.subr.mxu0 0.0
        %420 = vmatpush1.msra.mxu0 0.0
        %421 = vmatprep.subr.mxu0 0.0
        %422 = vmatpush1.msra.mxu0 0.0
        %423 = vmatprep.subr.mxu0 0.0
        %424 = vmatpush1.msra.mxu0 0.0
        %425 = vmatprep.subr.mxu0 0.0
        %426 = vmatpush1.msra.mxu0 0.0
        %427 = vmatprep.subr.mxu0 0.0
        %428 = vmatpush1.msra.mxu0 0.0
        %429 = vmatprep.subr.mxu0 0.0
        %430 = vmatpush1.msra.mxu0 0.0
        %431 = vmatprep.subr.mxu0 0.0
        %432 = vmatpush1.msra.mxu0 0.0
        %433 = vmatprep.subr.mxu0 0.0
        %434 = vmatpush1.msra.mxu0 0.0
        %435 = vmatprep.subr.mxu0 0.0
        %436 = vmatpush1.msra.mxu0 0.0
        %437 = vmatprep.subr.mxu0 0.0
        %438 = vmatpush1.msra.mxu0 0.0
        %439 = vmatprep.mubr.f32.mxu0 0.0
        %440 = vmatmul.mubr.f32.gmra.mrb[0].mxu0 %v295
        %v441 = vpop.f32.mrb[0].mxu0
        %v442 = vadd.f32 0.0, %v441
        %v443 = vpop.f32.mrb[0].mxu0
        %444 = vmatprep.mubr.f32.mxu0 0.0
        %445 = vmatmul.mubr.f32.gmra.mrb[0].mxu0 %v298
        %v446 = vpop.f32.mrb[0].mxu0
        %v447 = vadd.f32 0.0, %v446
        %v448 = vpop.f32.mrb[0].mxu0
        %449 = vdwg.mxu0
        %v450 = vld [vmem:[%s3] sm:$0xf]
        %s451 = scalar_lea.vmem %s3, 4
        %v452 = vld [vmem:[%s451] sm:$0xf]
        %vm453 = vcmask 31744
        %v455 = vsel %vm453, %v367, 0
        %v458 = vsel %vm453, %v372, 0
        %vm460 = vcmask 1043456
        %v462 = vsel %vm460, %v452, 0
        %464 = vmatprep.subr.mxu0 0.0
        %465 = vmatpush1.msra.mxu0 %v462
        %466 = vmatprep.subr.mxu0 0.0
        %467 = vmatpush1.msra.mxu0 0.0
        %468 = vmatprep.subr.mxu0 0.0
        %469 = vmatpush1.msra.mxu0 0.0
        %470 = vmatprep.subr.mxu0 0.0
        %471 = vmatpush1.msra.mxu0 0.0
        %472 = vmatprep.subr.mxu0 0.0
        %473 = vmatpush1.msra.mxu0 0.0
        %474 = vmatprep.subr.mxu0 0.0
        %475 = vmatpush1.msra.mxu0 0.0
        %476 = vmatprep.subr.mxu0 0.0
        %477 = vmatpush1.msra.mxu0 0.0
        %478 = vmatprep.subr.mxu0 0.0
        %479 = vmatpush1.msra.mxu0 0.0
        %480 = vmatprep.subr.mxu0 0.0
        %481 = vmatpush1.msra.mxu0 0.0
        %482 = vmatprep.subr.mxu0 0.0
        %483 = vmatpush1.msra.mxu0 0.0
        %484 = vmatprep.subr.mxu0 0.0
        %485 = vmatpush1.msra.mxu0 0.0
        %486 = vmatprep.subr.mxu0 0.0
        %487 = vmatpush1.msra.mxu0 0.0
        %488 = vmatprep.subr.mxu0 0.0
        %489 = vmatpush1.msra.mxu0 0.0
        %490 = vmatprep.subr.mxu0 0.0
        %491 = vmatpush1.msra.mxu0 0.0
        %492 = vmatprep.subr.mxu0 0.0
        %493 = vmatpush1.msra.mxu0 0.0
        %494 = vmatprep.subr.mxu0 0.0
        %495 = vmatpush1.msra.mxu0 0.0
        %496 = vmatprep.subr.mxu0 0.0
        %497 = vmatpush1.msra.mxu0 0.0
        %498 = vmatprep.subr.mxu0 0.0
        %499 = vmatpush1.msra.mxu0 0.0
        %500 = vmatprep.subr.mxu0 0.0
        %501 = vmatpush1.msra.mxu0 0.0
        %502 = vmatprep.subr.mxu0 0.0
        %503 = vmatpush1.msra.mxu0 0.0
        %504 = vmatprep.subr.mxu0 0.0
        %505 = vmatpush1.msra.mxu0 0.0
        %506 = vmatprep.subr.mxu0 0.0
        %507 = vmatpush1.msra.mxu0 0.0
        %508 = vmatprep.subr.mxu0 0.0
        %509 = vmatpush1.msra.mxu0 0.0
        %510 = vmatprep.subr.mxu0 0.0
        %511 = vmatpush1.msra.mxu0 0.0
        %512 = vmatprep.subr.mxu0 0.0
        %513 = vmatpush1.msra.mxu0 0.0
        %514 = vmatprep.subr.mxu0 0.0
        %515 = vmatpush1.msra.mxu0 0.0
        %516 = vmatprep.subr.mxu0 0.0
        %517 = vmatpush1.msra.mxu0 0.0
        %518 = vmatprep.subr.mxu0 0.0
        %519 = vmatpush1.msra.mxu0 0.0
        %520 = vmatprep.subr.mxu0 0.0
        %521 = vmatpush1.msra.mxu0 0.0
        %522 = vmatprep.subr.mxu0 0.0
        %523 = vmatpush1.msra.mxu0 0.0
        %524 = vmatprep.subr.mxu0 0.0
        %525 = vmatpush1.msra.mxu0 0.0
        %526 = vmatprep.subr.mxu0 0.0
        %527 = vmatpush1.msra.mxu0 0.0
        %528 = vmatprep.mubr.f32.mxu0 0.0
        %529 = vmatmul.mubr.f32.gmra.mrb[0].mxu0 %v455
        %v530 = vpop.f32.mrb[0].mxu0
        %v531 = vadd.f32 0.0, %v530
        %v532 = vpop.f32.mrb[0].mxu0
        %533 = vmatprep.mubr.f32.mxu0 0.0
        %534 = vmatmul.mubr.f32.gmra.mrb[0].mxu0 %v458
        %v535 = vpop.f32.mrb[0].mxu0
        %v536 = vadd.f32 0.0, %v535
        %v537 = vpop.f32.mrb[0].mxu0
        %538 = vdwg.mxu0
        %v540 = vsel %vm453, %v287, 0
        %v543 = vsel %vm453, %v288, 0
        %v546 = vsel %vm460, %v450, 0
        %548 = vmatprep.subr.mxu0 0.0
        %549 = vmatpush1.msra.mxu0 %v546
        %550 = vmatprep.subr.mxu0 0.0
        %551 = vmatpush1.msra.mxu0 0.0
        %552 = vmatprep.subr.mxu0 0.0
        %553 = vmatpush1.msra.mxu0 0.0
        %554 = vmatprep.subr.mxu0 0.0
        %555 = vmatpush1.msra.mxu0 0.0
        %556 = vmatprep.subr.mxu0 0.0
        %557 = vmatpush1.msra.mxu0 0.0
        %558 = vmatprep.subr.mxu0 0.0
        %559 = vmatpush1.msra.mxu0 0.0
        %560 = vmatprep.subr.mxu0 0.0
        %561 = vmatpush1.msra.mxu0 0.0
        %562 = vmatprep.subr.mxu0 0.0
        %563 = vmatpush1.msra.mxu0 0.0
        %564 = vmatprep.subr.mxu0 0.0
        %565 = vmatpush1.msra.mxu0 0.0
        %566 = vmatprep.subr.mxu0 0.0
        %567 = vmatpush1.msra.mxu0 0.0
        %568 = vmatprep.subr.mxu0 0.0
        %569 = vmatpush1.msra.mxu0 0.0
        %570 = vmatprep.subr.mxu0 0.0
        %571 = vmatpush1.msra.mxu0 0.0
        %572 = vmatprep.subr.mxu0 0.0
        %573 = vmatpush1.msra.mxu0 0.0
        %574 = vmatprep.subr.mxu0 0.0
        %575 = vmatpush1.msra.mxu0 0.0
        %576 = vmatprep.subr.mxu0 0.0
        %577 = vmatpush1.msra.mxu0 0.0
        %578 = vmatprep.subr.mxu0 0.0
        %579 = vmatpush1.msra.mxu0 0.0
        %580 = vmatprep.subr.mxu0 0.0
        %581 = vmatpush1.msra.mxu0 0.0
        %582 = vmatprep.subr.mxu0 0.0
        %583 = vmatpush1.msra.mxu0 0.0
        %584 = vmatprep.subr.mxu0 0.0
        %585 = vmatpush1.msra.mxu0 0.0
        %586 = vmatprep.subr.mxu0 0.0
        %587 = vmatpush1.msra.mxu0 0.0
        %588 = vmatprep.subr.mxu0 0.0
        %589 = vmatpush1.msra.mxu0 0.0
        %590 = vmatprep.subr.mxu0 0.0
        %591 = vmatpush1.msra.mxu0 0.0
        %592 = vmatprep.subr.mxu0 0.0
        %593 = vmatpush1.msra.mxu0 0.0
        %594 = vmatprep.subr.mxu0 0.0
        %595 = vmatpush1.msra.mxu0 0.0
        %596 = vmatprep.subr.mxu0 0.0
        %597 = vmatpush1.msra.mxu0 0.0
        %598 = vmatprep.subr.mxu0 0.0
        %599 = vmatpush1.msra.mxu0 0.0
        %600 = vmatprep.subr.mxu0 0.0
        %601 = vmatpush1.msra.mxu0 0.0
        %602 = vmatprep.subr.mxu0 0.0
        %603 = vmatpush1.msra.mxu0 0.0
        %604 = vmatprep.subr.mxu0 0.0
        %605 = vmatpush1.msra.mxu0 0.0
        %606 = vmatprep.subr.mxu0 0.0
        %607 = vmatpush1.msra.mxu0 0.0
        %608 = vmatprep.subr.mxu0 0.0
        %609 = vmatpush1.msra.mxu0 0.0
        %610 = vmatprep.subr.mxu0 0.0
        %611 = vmatpush1.msra.mxu0 0.0
        %612 = vmatprep.mubr.f32.mxu0 0.0
        %613 = vmatmul.mubr.f32.gmra.mrb[0].mxu0 %v540
        %v614 = vpop.f32.mrb[0].mxu0
        %v615 = vadd.f32 %v531, %v614
        %v616 = vpop.f32.mrb[0].mxu0
        %617 = vmatprep.mubr.f32.mxu0 0.0
        %618 = vmatmul.mubr.f32.gmra.mrb[0].mxu0 %v543
        %v619 = vpop.f32.mrb[0].mxu0
        %v620 = vadd.f32 %v536, %v619
        %v621 = vpop.f32.mrb[0].mxu0
        %622 = vdwg.mxu0
        %v623 = vld [vmem:[#allocation2] sm:$0xff]
        %v624 = vld [vmem:[#allocation2 + $0x8] sm:$0xff]
        %v625 = vld [vmem:[#allocation2 + $0x10] sm:$0xff]
        %v626 = vld [vmem:[#allocation2 + $0x18] sm:$0xff]
        %vm627 = vcmask 261120
        %v629 = vsel %vm627, %v289, 0
        %v632 = vsel %vm627, %v290, 0
        %634 = vmatprep.subr.mxu0 0.0
        %635 = vmatpush1.msra.mxu0 %v623
        %636 = vmatprep.subr.mxu0 0.0
        %637 = vmatpush1.msra.mxu0 %v624
        %638 = vmatprep.subr.mxu0 0.0
        %639 = vmatpush1.msra.mxu0 %v625
        %640 = vmatprep.subr.mxu0 0.0
        %641 = vmatpush1.msra.mxu0 %v626
        %642 = vmatprep.subr.mxu0 0.0
        %643 = vmatpush1.msra.mxu0 0.0
        %644 = vmatprep.subr.mxu0 0.0
        %645 = vmatpush1.msra.mxu0 0.0
        %646 = vmatprep.subr.mxu0 0.0
        %647 = vmatpush1.msra.mxu0 0.0
        %648 = vmatprep.subr.mxu0 0.0
        %649 = vmatpush1.msra.mxu0 0.0
        %650 = vmatprep.subr.mxu0 0.0
        %651 = vmatpush1.msra.mxu0 0.0
        %652 = vmatprep.subr.mxu0 0.0
        %653 = vmatpush1.msra.mxu0 0.0
        %654 = vmatprep.subr.mxu0 0.0
        %655 = vmatpush1.msra.mxu0 0.0
        %656 = vmatprep.subr.mxu0 0.0
        %657 = vmatpush1.msra.mxu0 0.0
        %658 = vmatprep.subr.mxu0 0.0
        %659 = vmatpush1.msra.mxu0 0.0
        %660 = vmatprep.subr.mxu0 0.0
        %661 = vmatpush1.msra.mxu0 0.0
        %662 = vmatprep.subr.mxu0 0.0
        %663 = vmatpush1.msra.mxu0 0.0
        %664 = vmatprep.subr.mxu0 0.0
        %665 = vmatpush1.msra.mxu0 0.0
        %666 = vmatprep.subr.mxu0 0.0
        %667 = vmatpush1.msra.mxu0 0.0
        %668 = vmatprep.subr.mxu0 0.0
        %669 = vmatpush1.msra.mxu0 0.0
        %670 = vmatprep.subr.mxu0 0.0
        %671 = vmatpush1.msra.mxu0 0.0
        %672 = vmatprep.subr.mxu0 0.0
        %673 = vmatpush1.msra.mxu0 0.0
        %674 = vmatprep.subr.mxu0 0.0
        %675 = vmatpush1.msra.mxu0 0.0
        %676 = vmatprep.subr.mxu0 0.0
        %677 = vmatpush1.msra.mxu0 0.0
        %678 = vmatprep.subr.mxu0 0.0
        %679 = vmatpush1.msra.mxu0 0.0
        %680 = vmatprep.subr.mxu0 0.0
        %681 = vmatpush1.msra.mxu0 0.0
        %682 = vmatprep.subr.mxu0 0.0
        %683 = vmatpush1.msra.mxu0 0.0
        %684 = vmatprep.subr.mxu0 0.0
        %685 = vmatpush1.msra.mxu0 0.0
        %686 = vmatprep.subr.mxu0 0.0
        %687 = vmatpush1.msra.mxu0 0.0
        %688 = vmatprep.subr.mxu0 0.0
        %689 = vmatpush1.msra.mxu0 0.0
        %690 = vmatprep.subr.mxu0 0.0
        %691 = vmatpush1.msra.mxu0 0.0
        %692 = vmatprep.subr.mxu0 0.0
        %693 = vmatpush1.msra.mxu0 0.0
        %694 = vmatprep.subr.mxu0 0.0
        %695 = vmatpush1.msra.mxu0 0.0
        %696 = vmatprep.subr.mxu0 0.0
        %697 = vmatpush1.msra.mxu0 0.0
        %698 = vmatprep.mubr.f32.mxu0 0.0
        %699 = vmatmul.mubr.f32.gmra.mrb[0].mxu0 %v629
        %v700 = vpop.f32.mrb[0].mxu0
        %v701 = vadd.f32 0.0, %v700
        %v702 = vpop.f32.mrb[0].mxu0
        %703 = vmatprep.mubr.f32.mxu0 0.0
        %704 = vmatmul.mubr.f32.gmra.mrb[0].mxu0 %v632
        %v705 = vpop.f32.mrb[0].mxu0
        %v706 = vadd.f32 0.0, %v705
        %v707 = vpop.f32.mrb[0].mxu0
        %708 = vdwg.mxu0
        %v709 = vadd.f32 %v615, %v701
        %v710 = vadd.f32 %v620, %v706
        %s711 = scalar_lea.vmem [#allocation2], 32
        %v712 = vld [vmem:[%s711] sm:$0xff]
        %v713 = vld [vmem:[%s711 + $0x8] sm:$0xff]
        %v714 = vld [vmem:[%s711 + $0x10] sm:$0xff]
        %v715 = vld [vmem:[%s711 + $0x18] sm:$0xff]
        %v717 = vsel %vm627, %v442, 0
        %v720 = vsel %vm627, %v447, 0
        %722 = vmatprep.subr.mxu0 0.0
        %723 = vmatpush1.msra.mxu0 %v712
        %724 = vmatprep.subr.mxu0 0.0
        %725 = vmatpush1.msra.mxu0 %v713
        %726 = vmatprep.subr.mxu0 0.0
        %727 = vmatpush1.msra.mxu0 %v714
        %728 = vmatprep.subr.mxu0 0.0
        %729 = vmatpush1.msra.mxu0 %v715
        %730 = vmatprep.subr.mxu0 0.0
        %731 = vmatpush1.msra.mxu0 0.0
        %732 = vmatprep.subr.mxu0 0.0
        %733 = vmatpush1.msra.mxu0 0.0
        %734 = vmatprep.subr.mxu0 0.0
        %735 = vmatpush1.msra.mxu0 0.0
        %736 = vmatprep.subr.mxu0 0.0
        %737 = vmatpush1.msra.mxu0 0.0
        %738 = vmatprep.subr.mxu0 0.0
        %739 = vmatpush1.msra.mxu0 0.0
        %740 = vmatprep.subr.mxu0 0.0
        %741 = vmatpush1.msra.mxu0 0.0
        %742 = vmatprep.subr.mxu0 0.0
        %743 = vmatpush1.msra.mxu0 0.0
        %744 = vmatprep.subr.mxu0 0.0
        %745 = vmatpush1.msra.mxu0 0.0
        %746 = vmatprep.subr.mxu0 0.0
        %747 = vmatpush1.msra.mxu0 0.0
        %748 = vmatprep.subr.mxu0 0.0
        %749 = vmatpush1.msra.mxu0 0.0
        %750 = vmatprep.subr.mxu0 0.0
        %751 = vmatpush1.msra.mxu0 0.0
        %752 = vmatprep.subr.mxu0 0.0
        %753 = vmatpush1.msra.mxu0 0.0
        %754 = vmatprep.subr.mxu0 0.0
        %755 = vmatpush1.msra.mxu0 0.0
        %756 = vmatprep.subr.mxu0 0.0
        %757 = vmatpush1.msra.mxu0 0.0
        %758 = vmatprep.subr.mxu0 0.0
        %759 = vmatpush1.msra.mxu0 0.0
        %760 = vmatprep.subr.mxu0 0.0
        %761 = vmatpush1.msra.mxu0 0.0
        %762 = vmatprep.subr.mxu0 0.0
        %763 = vmatpush1.msra.mxu0 0.0
        %764 = vmatprep.subr.mxu0 0.0
        %765 = vmatpush1.msra.mxu0 0.0
        %766 = vmatprep.subr.mxu0 0.0
        %767 = vmatpush1.msra.mxu0 0.0
        %768 = vmatprep.subr.mxu0 0.0
        %769 = vmatpush1.msra.mxu0 0.0
        %770 = vmatprep.subr.mxu0 0.0
        %771 = vmatpush1.msra.mxu0 0.0
        %772 = vmatprep.subr.mxu0 0.0
        %773 = vmatpush1.msra.mxu0 0.0
        %774 = vmatprep.subr.mxu0 0.0
        %775 = vmatpush1.msra.mxu0 0.0
        %776 = vmatprep.subr.mxu0 0.0
        %777 = vmatpush1.msra.mxu0 0.0
        %778 = vmatprep.subr.mxu0 0.0
        %779 = vmatpush1.msra.mxu0 0.0
        %780 = vmatprep.subr.mxu0 0.0
        %781 = vmatpush1.msra.mxu0 0.0
        %782 = vmatprep.subr.mxu0 0.0
        %783 = vmatpush1.msra.mxu0 0.0
        %784 = vmatprep.subr.mxu0 0.0
        %785 = vmatpush1.msra.mxu0 0.0
        %786 = vmatprep.mubr.f32.mxu0 0.0
        %787 = vmatmul.mubr.f32.gmra.mrb[0].mxu0 %v717
        %v788 = vpop.f32.mrb[0].mxu0
        %v789 = vadd.f32 0.0, %v788
        %v790 = vpop.f32.mrb[0].mxu0
        %791 = vmatprep.mubr.f32.mxu0 0.0
        %792 = vmatmul.mubr.f32.gmra.mrb[0].mxu0 %v720
        %v793 = vpop.f32.mrb[0].mxu0
        %v794 = vadd.f32 0.0, %v793
        %v795 = vpop.f32.mrb[0].mxu0
        %796 = vdwg.mxu0
        %v797 = vadd.f32 %v709, %v789
        %v798 = vadd.f32 %v710, %v794
        %v799 = vld [vmem:[%s5] sm:$0x1]
        %v801 = vlaneseq
        %v802 = vshrl.u32 %v801, 7
        %v803 = vsub.s32 0, %v802
        %v804 = vrot.slane %v799, %v803
        %v806 = vadd.f32 %v797, %v804
        %v807 = vadd.f32 %v798, %v804
        %v808 = vxor.u32 %v806, 2147483648
        %v809 = vxor.u32 %v807, 2147483648
        %v810 = vmul.f32 %v808, 1.442695
        %v811 = vpow.pop %v810
        %v812 = vmul.f32 %v809, 1.442695
        %v813 = vpow.pop %v812
        %v814 = vadd.f32 %v811, 1.0
        %v815 = vadd.f32 %v813, 1.0
        %v816 = vrcp.pop %v814
        %v817 = vmul.f32 1.0, %v816
        %v818 = vrcp.pop %v815
        %v819 = vmul.f32 1.0, %v818
        %s820 = scalar_lea.vmem %s3, 8
        %v821 = vld [vmem:[%s820] sm:$0xf]
        %s822 = scalar_lea.vmem %s3, 12
        %v823 = vld [vmem:[%s822] sm:$0xf]
        %v825 = vsel %vm460, %v823, 0
        %827 = vmatprep.subr.mxu0 0.0
        %828 = vmatpush1.msra.mxu0 %v825
        %829 = vmatprep.subr.mxu0 0.0
        %830 = vmatpush1.msra.mxu0 0.0
        %831 = vmatprep.subr.mxu0 0.0
        %832 = vmatpush1.msra.mxu0 0.0
        %833 = vmatprep.subr.mxu0 0.0
        %834 = vmatpush1.msra.mxu0 0.0
        %835 = vmatprep.subr.mxu0 0.0
        %836 = vmatpush1.msra.mxu0 0.0
        %837 = vmatprep.subr.mxu0 0.0
        %838 = vmatpush1.msra.mxu0 0.0
        %839 = vmatprep.subr.mxu0 0.0
        %840 = vmatpush1.msra.mxu0 0.0
        %841 = vmatprep.subr.mxu0 0.0
        %842 = vmatpush1.msra.mxu0 0.0
        %843 = vmatprep.subr.mxu0 0.0
        %844 = vmatpush1.msra.mxu0 0.0
        %845 = vmatprep.subr.mxu0 0.0
        %846 = vmatpush1.msra.mxu0 0.0
        %847 = vmatprep.subr.mxu0 0.0
        %848 = vmatpush1.msra.mxu0 0.0
        %849 = vmatprep.subr.mxu0 0.0
        %850 = vmatpush1.msra.mxu0 0.0
        %851 = vmatprep.subr.mxu0 0.0
        %852 = vmatpush1.msra.mxu0 0.0
        %853 = vmatprep.subr.mxu0 0.0
        %854 = vmatpush1.msra.mxu0 0.0
        %855 = vmatprep.subr.mxu0 0.0
        %856 = vmatpush1.msra.mxu0 0.0
        %857 = vmatprep.subr.mxu0 0.0
        %858 = vmatpush1.msra.mxu0 0.0
        %859 = vmatprep.subr.mxu0 0.0
        %860 = vmatpush1.msra.mxu0 0.0
        %861 = vmatprep.subr.mxu0 0.0
        %862 = vmatpush1.msra.mxu0 0.0
        %863 = vmatprep.subr.mxu0 0.0
        %864 = vmatpush1.msra.mxu0 0.0
        %865 = vmatprep.subr.mxu0 0.0
        %866 = vmatpush1.msra.mxu0 0.0
        %867 = vmatprep.subr.mxu0 0.0
        %868 = vmatpush1.msra.mxu0 0.0
        %869 = vmatprep.subr.mxu0 0.0
        %870 = vmatpush1.msra.mxu0 0.0
        %871 = vmatprep.subr.mxu0 0.0
        %872 = vmatpush1.msra.mxu0 0.0
        %873 = vmatprep.subr.mxu0 0.0
        %874 = vmatpush1.msra.mxu0 0.0
        %875 = vmatprep.subr.mxu0 0.0
        %876 = vmatpush1.msra.mxu0 0.0
        %877 = vmatprep.subr.mxu0 0.0
        %878 = vmatpush1.msra.mxu0 0.0
        %879 = vmatprep.subr.mxu0 0.0
        %880 = vmatpush1.msra.mxu0 0.0
        %881 = vmatprep.subr.mxu0 0.0
        %882 = vmatpush1.msra.mxu0 0.0
        %883 = vmatprep.subr.mxu0 0.0
        %884 = vmatpush1.msra.mxu0 0.0
        %885 = vmatprep.subr.mxu0 0.0
        %886 = vmatpush1.msra.mxu0 0.0
        %887 = vmatprep.subr.mxu0 0.0
        %888 = vmatpush1.msra.mxu0 0.0
        %889 = vmatprep.subr.mxu0 0.0
        %890 = vmatpush1.msra.mxu0 0.0
        %891 = vmatprep.mubr.f32.mxu0 0.0
        %892 = vmatmul.mubr.f32.gmra.mrb[0].mxu0 %v455
        %v893 = vpop.f32.mrb[0].mxu0
        %v894 = vadd.f32 0.0, %v893
        %v895 = vpop.f32.mrb[0].mxu0
        %896 = vmatprep.mubr.f32.mxu0 0.0
        %897 = vmatmul.mubr.f32.gmra.mrb[0].mxu0 %v458
        %v898 = vpop.f32.mrb[0].mxu0
        %v899 = vadd.f32 0.0, %v898
        %v900 = vpop.f32.mrb[0].mxu0
        %901 = vdwg.mxu0
        %v903 = vsel %vm460, %v821, 0
        %905 = vmatprep.subr.mxu0 0.0
        %906 = vmatpush1.msra.mxu0 %v903
        %907 = vmatprep.subr.mxu0 0.0
        %908 = vmatpush1.msra.mxu0 0.0
        %909 = vmatprep.subr.mxu0 0.0
        %910 = vmatpush1.msra.mxu0 0.0
        %911 = vmatprep.subr.mxu0 0.0
        %912 = vmatpush1.msra.mxu0 0.0
        %913 = vmatprep.subr.mxu0 0.0
        %914 = vmatpush1.msra.mxu0 0.0
        %915 = vmatprep.subr.mxu0 0.0
        %916 = vmatpush1.msra.mxu0 0.0
        %917 = vmatprep.subr.mxu0 0.0
        %918 = vmatpush1.msra.mxu0 0.0
        %919 = vmatprep.subr.mxu0 0.0
        %920 = vmatpush1.msra.mxu0 0.0
        %921 = vmatprep.subr.mxu0 0.0
        %922 = vmatpush1.msra.mxu0 0.0
        %923 = vmatprep.subr.mxu0 0.0
        %924 = vmatpush1.msra.mxu0 0.0
        %925 = vmatprep.subr.mxu0 0.0
        %926 = vmatpush1.msra.mxu0 0.0
        %927 = vmatprep.subr.mxu0 0.0
        %928 = vmatpush1.msra.mxu0 0.0
        %929 = vmatprep.subr.mxu0 0.0
        %930 = vmatpush1.msra.mxu0 0.0
        %931 = vmatprep.subr.mxu0 0.0
        %932 = vmatpush1.msra.mxu0 0.0
        %933 = vmatprep.subr.mxu0 0.0
        %934 = vmatpush1.msra.mxu0 0.0
        %935 = vmatprep.subr.mxu0 0.0
        %936 = vmatpush1.msra.mxu0 0.0
        %937 = vmatprep.subr.mxu0 0.0
        %938 = vmatpush1.msra.mxu0 0.0
        %939 = vmatprep.subr.mxu0 0.0
        %940 = vmatpush1.msra.mxu0 0.0
        %941 = vmatprep.subr.mxu0 0.0
        %942 = vmatpush1.msra.mxu0 0.0
        %943 = vmatprep.subr.mxu0 0.0
        %944 = vmatpush1.msra.mxu0 0.0
        %945 = vmatprep.subr.mxu0 0.0
        %946 = vmatpush1.msra.mxu0 0.0
        %947 = vmatprep.subr.mxu0 0.0
        %948 = vmatpush1.msra.mxu0 0.0
        %949 = vmatprep.subr.mxu0 0.0
        %950 = vmatpush1.msra.mxu0 0.0
        %951 = vmatprep.subr.mxu0 0.0
        %952 = vmatpush1.msra.mxu0 0.0
        %953 = vmatprep.subr.mxu0 0.0
        %954 = vmatpush1.msra.mxu0 0.0
        %955 = vmatprep.subr.mxu0 0.0
        %956 = vmatpush1.msra.mxu0 0.0
        %957 = vmatprep.subr.mxu0 0.0
        %958 = vmatpush1.msra.mxu0 0.0
        %959 = vmatprep.subr.mxu0 0.0
        %960 = vmatpush1.msra.mxu0 0.0
        %961 = vmatprep.subr.mxu0 0.0
        %962 = vmatpush1.msra.mxu0 0.0
        %963 = vmatprep.subr.mxu0 0.0
        %964 = vmatpush1.msra.mxu0 0.0
        %965 = vmatprep.subr.mxu0 0.0
        %966 = vmatpush1.msra.mxu0 0.0
        %967 = vmatprep.subr.mxu0 0.0
        %968 = vmatpush1.msra.mxu0 0.0
        %969 = vmatprep.mubr.f32.mxu0 0.0
        %970 = vmatmul.mubr.f32.gmra.mrb[0].mxu0 %v540
        %v971 = vpop.f32.mrb[0].mxu0
        %v972 = vadd.f32 %v894, %v971
        %v973 = vpop.f32.mrb[0].mxu0
        %974 = vmatprep.mubr.f32.mxu0 0.0
        %975 = vmatmul.mubr.f32.gmra.mrb[0].mxu0 %v543
        %v976 = vpop.f32.mrb[0].mxu0
        %v977 = vadd.f32 %v899, %v976
        %v978 = vpop.f32.mrb[0].mxu0
        %979 = vdwg.mxu0
        %s980 = scalar_lea.vmem [#allocation2], 64
        %v981 = vld [vmem:[%s980] sm:$0xff]
        %v982 = vld [vmem:[%s980 + $0x8] sm:$0xff]
        %v983 = vld [vmem:[%s980 + $0x10] sm:$0xff]
        %v984 = vld [vmem:[%s980 + $0x18] sm:$0xff]
        %985 = vmatprep.subr.mxu0 0.0
        %986 = vmatpush1.msra.mxu0 %v981
        %987 = vmatprep.subr.mxu0 0.0
        %988 = vmatpush1.msra.mxu0 %v982
        %989 = vmatprep.subr.mxu0 0.0
        %990 = vmatpush1.msra.mxu0 %v983
        %991 = vmatprep.subr.mxu0 0.0
        %992 = vmatpush1.msra.mxu0 %v984
        %993 = vmatprep.subr.mxu0 0.0
        %994 = vmatpush1.msra.mxu0 0.0
        %995 = vmatprep.subr.mxu0 0.0
        %996 = vmatpush1.msra.mxu0 0.0
        %997 = vmatprep.subr.mxu0 0.0
        %998 = vmatpush1.msra.mxu0 0.0
        %999 = vmatprep.subr.mxu0 0.0
        %1000 = vmatpush1.msra.mxu0 0.0
        %1001 = vmatprep.subr.mxu0 0.0
        %1002 = vmatpush1.msra.mxu0 0.0
        %1003 = vmatprep.subr.mxu0 0.0
        %1004 = vmatpush1.msra.mxu0 0.0
        %1005 = vmatprep.subr.mxu0 0.0
        %1006 = vmatpush1.msra.mxu0 0.0
        %1007 = vmatprep.subr.mxu0 0.0
        %1008 = vmatpush1.msra.mxu0 0.0
        %1009 = vmatprep.subr.mxu0 0.0
        %1010 = vmatpush1.msra.mxu0 0.0
        %1011 = vmatprep.subr.mxu0 0.0
        %1012 = vmatpush1.msra.mxu0 0.0
        %1013 = vmatprep.subr.mxu0 0.0
        %1014 = vmatpush1.msra.mxu0 0.0
        %1015 = vmatprep.subr.mxu0 0.0
        %1016 = vmatpush1.msra.mxu0 0.0
        %1017 = vmatprep.subr.mxu0 0.0
        %1018 = vmatpush1.msra.mxu0 0.0
        %1019 = vmatprep.subr.mxu0 0.0
        %1020 = vmatpush1.msra.mxu0 0.0
        %1021 = vmatprep.subr.mxu0 0.0
        %1022 = vmatpush1.msra.mxu0 0.0
        %1023 = vmatprep.subr.mxu0 0.0
        %1024 = vmatpush1.msra.mxu0 0.0
        %1025 = vmatprep.subr.mxu0 0.0
        %1026 = vmatpush1.msra.mxu0 0.0
        %1027 = vmatprep.subr.mxu0 0.0
        %1028 = vmatpush1.msra.mxu0 0.0
        %1029 = vmatprep.subr.mxu0 0.0
        %1030 = vmatpush1.msra.mxu0 0.0
        %1031 = vmatprep.subr.mxu0 0.0
        %1032 = vmatpush1.msra.mxu0 0.0
        %1033 = vmatprep.subr.mxu0 0.0
        %1034 = vmatpush1.msra.mxu0 0.0
        %1035 = vmatprep.subr.mxu0 0.0
        %1036 = vmatpush1.msra.mxu0 0.0
        %1037 = vmatprep.subr.mxu0 0.0
        %1038 = vmatpush1.msra.mxu0 0.0
        %1039 = vmatprep.subr.mxu0 0.0
        %1040 = vmatpush1.msra.mxu0 0.0
        %1041 = vmatprep.subr.mxu0 0.0
        %1042 = vmatpush1.msra.mxu0 0.0
        %1043 = vmatprep.subr.mxu0 0.0
        %1044 = vmatpush1.msra.mxu0 0.0
        %1045 = vmatprep.subr.mxu0 0.0
        %1046 = vmatpush1.msra.mxu0 0.0
        %1047 = vmatprep.subr.mxu0 0.0
        %1048 = vmatpush1.msra.mxu0 0.0
        %1049 = vmatprep.mubr.f32.mxu0 0.0
        %1050 = vmatmul.mubr.f32.gmra.mrb[0].mxu0 %v629
        %v1051 = vpop.f32.mrb[0].mxu0
        %v1052 = vadd.f32 0.0, %v1051
        %v1053 = vpop.f32.mrb[0].mxu0
        %1054 = vmatprep.mubr.f32.mxu0 0.0
        %1055 = vmatmul.mubr.f32.gmra.mrb[0].mxu0 %v632
        %v1056 = vpop.f32.mrb[0].mxu0
        %v1057 = vadd.f32 0.0, %v1056
        %v1058 = vpop.f32.mrb[0].mxu0
        %1059 = vdwg.mxu0
        %v1060 = vadd.f32 %v972, %v1052
        %v1061 = vadd.f32 %v977, %v1057
        %s1062 = scalar_lea.vmem [#allocation2], 96
        %v1063 = vld [vmem:[%s1062] sm:$0xff]
        %v1064 = vld [vmem:[%s1062 + $0x8] sm:$0xff]
        %v1065 = vld [vmem:[%s1062 + $0x10] sm:$0xff]
        %v1066 = vld [vmem:[%s1062 + $0x18] sm:$0xff]
        %1067 = vmatprep.subr.mxu0 0.0
        %1068 = vmatpush1.msra.mxu0 %v1063
        %1069 = vmatprep.subr.mxu0 0.0
        %1070 = vmatpush1.msra.mxu0 %v1064
        %1071 = vmatprep.subr.mxu0 0.0
        %1072 = vmatpush1.msra.mxu0 %v1065
        %1073 = vmatprep.subr.mxu0 0.0
        %1074 = vmatpush1.msra.mxu0 %v1066
        %1075 = vmatprep.subr.mxu0 0.0
        %1076 = vmatpush1.msra.mxu0 0.0
        %1077 = vmatprep.subr.mxu0 0.0
        %1078 = vmatpush1.msra.mxu0 0.0
        %1079 = vmatprep.subr.mxu0 0.0
        %1080 = vmatpush1.msra.mxu0 0.0
        %1081 = vmatprep.subr.mxu0 0.0
        %1082 = vmatpush1.msra.mxu0 0.0
        %1083 = vmatprep.subr.mxu0 0.0
        %1084 = vmatpush1.msra.mxu0 0.0
        %1085 = vmatprep.subr.mxu0 0.0
        %1086 = vmatpush1.msra.mxu0 0.0
        %1087 = vmatprep.subr.mxu0 0.0
        %1088 = vmatpush1.msra.mxu0 0.0
        %1089 = vmatprep.subr.mxu0 0.0
        %1090 = vmatpush1.msra.mxu0 0.0
        %1091 = vmatprep.subr.mxu0 0.0
        %1092 = vmatpush1.msra.mxu0 0.0
        %1093 = vmatprep.subr.mxu0 0.0
        %1094 = vmatpush1.msra.mxu0 0.0
        %1095 = vmatprep.subr.mxu0 0.0
        %1096 = vmatpush1.msra.mxu0 0.0
        %1097 = vmatprep.subr.mxu0 0.0
        %1098 = vmatpush1.msra.mxu0 0.0
        %1099 = vmatprep.subr.mxu0 0.0
        %1100 = vmatpush1.msra.mxu0 0.0
        %1101 = vmatprep.subr.mxu0 0.0
        %1102 = vmatpush1.msra.mxu0 0.0
        %1103 = vmatprep.subr.mxu0 0.0
        %1104 = vmatpush1.msra.mxu0 0.0
        %1105 = vmatprep.subr.mxu0 0.0
        %1106 = vmatpush1.msra.mxu0 0.0
        %1107 = vmatprep.subr.mxu0 0.0
        %1108 = vmatpush1.msra.mxu0 0.0
        %1109 = vmatprep.subr.mxu0 0.0
        %1110 = vmatpush1.msra.mxu0 0.0
        %1111 = vmatprep.subr.mxu0 0.0
        %1112 = vmatpush1.msra.mxu0 0.0
        %1113 = vmatprep.subr.mxu0 0.0
        %1114 = vmatpush1.msra.mxu0 0.0
        %1115 = vmatprep.subr.mxu0 0.0
        %1116 = vmatpush1.msra.mxu0 0.0
        %1117 = vmatprep.subr.mxu0 0.0
        %1118 = vmatpush1.msra.mxu0 0.0
        %1119 = vmatprep.subr.mxu0 0.0
        %1120 = vmatpush1.msra.mxu0 0.0
        %1121 = vmatprep.subr.mxu0 0.0
        %1122 = vmatpush1.msra.mxu0 0.0
        %1123 = vmatprep.subr.mxu0 0.0
        %1124 = vmatpush1.msra.mxu0 0.0
        %1125 = vmatprep.subr.mxu0 0.0
        %1126 = vmatpush1.msra.mxu0 0.0
        %1127 = vmatprep.subr.mxu0 0.0
        %1128 = vmatpush1.msra.mxu0 0.0
        %1129 = vmatprep.subr.mxu0 0.0
        %1130 = vmatpush1.msra.mxu0 0.0
        %1131 = vmatprep.mubr.f32.mxu0 0.0
        %1132 = vmatmul.mubr.f32.gmra.mrb[0].mxu0 %v717
        %v1133 = vpop.f32.mrb[0].mxu0
        %v1134 = vadd.f32 0.0, %v1133
        %v1135 = vpop.f32.mrb[0].mxu0
        %1136 = vmatprep.mubr.f32.mxu0 0.0
        %1137 = vmatmul.mubr.f32.gmra.mrb[0].mxu0 %v720
        %v1138 = vpop.f32.mrb[0].mxu0
        %v1139 = vadd.f32 0.0, %v1138
        %v1140 = vpop.f32.mrb[0].mxu0
        %1141 = vdwg.mxu0
        %v1142 = vadd.f32 %v1060, %v1134
        %v1143 = vadd.f32 %v1061, %v1139
        %s1144 = scalar_lea.vmem %s5, 1
        %v1145 = vld [vmem:[%s1144] sm:$0x1]
        %v1147 = vlaneseq
        %v1148 = vshrl.u32 %v1147, 7
        %v1149 = vsub.s32 0, %v1148
        %v1150 = vrot.slane %v1145, %v1149
        %v1152 = vadd.f32 %v1142, %v1150
        %v1153 = vadd.f32 %v1143, %v1150
        %v1154 = vxor.u32 %v1152, 2147483648
        %v1155 = vxor.u32 %v1153, 2147483648
        %v1156 = vmul.f32 %v1154, 1.442695
        %v1157 = vpow.pop %v1156
        %v1158 = vmul.f32 %v1155, 1.442695
        %v1159 = vpow.pop %v1158
        %v1160 = vadd.f32 %v1157, 1.0
        %v1161 = vadd.f32 %v1159, 1.0
        %v1162 = vrcp.pop %v1160
        %v1163 = vmul.f32 1.0, %v1162
        %v1164 = vrcp.pop %v1161
        %v1165 = vmul.f32 1.0, %v1164
        %v1166 = vmul.f32 %v817, %v289
        %v1167 = vmul.f32 %v819, %v290
        %1168 = vmatprep.subr.mxu0 0.0
        %1169 = vmatpush1.msra.mxu0 %v1166
        %1170 = vmatprep.subr.mxu0 0.0
        %1171 = vmatpush1.msra.mxu0 %v1167
        %1172 = vmatprep.subr.mxu0 0.0
        %1173 = vmatpush1.msra.mxu0 0.0
        %1174 = vmatprep.subr.mxu0 0.0
        %1175 = vmatpush1.msra.mxu0 0.0
        %1176 = vmatprep.subr.mxu0 0.0
        %1177 = vmatpush1.msra.mxu0 0.0
        %1178 = vmatprep.subr.mxu0 0.0
        %1179 = vmatpush1.msra.mxu0 0.0
        %1180 = vmatprep.subr.mxu0 0.0
        %1181 = vmatpush1.msra.mxu0 0.0
        %1182 = vmatprep.subr.mxu0 0.0
        %1183 = vmatpush1.msra.mxu0 0.0
        %1184 = vmatprep.subr.mxu0 0.0
        %1185 = vmatpush1.msra.mxu0 0.0
        %1186 = vmatprep.subr.mxu0 0.0
        %1187 = vmatpush1.msra.mxu0 0.0
        %1188 = vmatprep.subr.mxu0 0.0
        %1189 = vmatpush1.msra.mxu0 0.0
        %1190 = vmatprep.subr.mxu0 0.0
        %1191 = vmatpush1.msra.mxu0 0.0
        %1192 = vmatprep.subr.mxu0 0.0
        %1193 = vmatpush1.msra.mxu0 0.0
        %1194 = vmatprep.subr.mxu0 0.0
        %1195 = vmatpush1.msra.mxu0 0.0
        %1196 = vmatprep.subr.mxu0 0.0
        %1197 = vmatpush1.msra.mxu0 0.0
        %1198 = vmatprep.subr.mxu0 0.0
        %1199 = vmatpush1.msra.mxu0 0.0
        %1200 = vmatprep.subr.mxu0 0.0
        %1201 = vmatpush1.msra.mxu0 0.0
        %1202 = vmatprep.subr.mxu0 0.0
        %1203 = vmatpush1.msra.mxu0 0.0
        %1204 = vmatprep.subr.mxu0 0.0
        %1205 = vmatpush1.msra.mxu0 0.0
        %1206 = vmatprep.subr.mxu0 0.0
        %1207 = vmatpush1.msra.mxu0 0.0
        %1208 = vmatprep.subr.mxu0 0.0
        %1209 = vmatpush1.msra.mxu0 0.0
        %1210 = vmatprep.subr.mxu0 0.0
        %1211 = vmatpush1.msra.mxu0 0.0
        %1212 = vmatprep.subr.mxu0 0.0
        %1213 = vmatpush1.msra.mxu0 0.0
        %1214 = vmatprep.subr.mxu0 0.0
        %1215 = vmatpush1.msra.mxu0 0.0
        %1216 = vmatprep.subr.mxu0 0.0
        %1217 = vmatpush1.msra.mxu0 0.0
        %1218 = vmatprep.subr.mxu0 0.0
        %1219 = vmatpush1.msra.mxu0 0.0
        %1220 = vmatprep.subr.mxu0 0.0
        %1221 = vmatpush1.msra.mxu0 0.0
        %1222 = vmatprep.subr.mxu0 0.0
        %1223 = vmatpush1.msra.mxu0 0.0
        %1224 = vmatprep.subr.mxu0 0.0
        %1225 = vmatpush1.msra.mxu0 0.0
        %1226 = vmatprep.subr.mxu0 0.0
        %1227 = vmatpush1.msra.mxu0 0.0
        %1228 = vmatprep.subr.mxu0 0.0
        %1229 = vmatpush1.msra.mxu0 0.0
        %1230 = vmatprep.subr.mxu0 0.0
        %1231 = vmatpush1.msra.mxu0 0.0
        %1232 = vmatprep.mubr.f32.mxu0 0.0
        %1233 = vmatmul.mubr.f32.gmra.mrb[0].mxu0 %v295
        %v1234 = vpop.f32.mrb[0].mxu0
        %v1235 = vadd.f32 0.0, %v1234
        %v1236 = vpop.f32.mrb[0].mxu0
        %1237 = vmatprep.mubr.f32.mxu0 0.0
        %1238 = vmatmul.mubr.f32.gmra.mrb[0].mxu0 %v298
        %v1239 = vpop.f32.mrb[0].mxu0
        %v1240 = vadd.f32 0.0, %v1239
        %v1241 = vpop.f32.mrb[0].mxu0
        %1242 = vdwg.mxu0
        %s1243 = scalar_lea.vmem %s3, 16
        %v1244 = vld [vmem:[%s1243] sm:$0xf]
        %s1245 = scalar_lea.vmem %s3, 20
        %v1246 = vld [vmem:[%s1245] sm:$0xf]
        %v1248 = vsel %vm460, %v1246, 0
        %1250 = vmatprep.subr.mxu0 0.0
        %1251 = vmatpush1.msra.mxu0 %v1248
        %1252 = vmatprep.subr.mxu0 0.0
        %1253 = vmatpush1.msra.mxu0 0.0
        %1254 = vmatprep.subr.mxu0 0.0
        %1255 = vmatpush1.msra.mxu0 0.0
        %1256 = vmatprep.subr.mxu0 0.0
        %1257 = vmatpush1.msra.mxu0 0.0
        %1258 = vmatprep.subr.mxu0 0.0
        %1259 = vmatpush1.msra.mxu0 0.0
        %1260 = vmatprep.subr.mxu0 0.0
        %1261 = vmatpush1.msra.mxu0 0.0
        %1262 = vmatprep.subr.mxu0 0.0
        %1263 = vmatpush1.msra.mxu0 0.0
        %1264 = vmatprep.subr.mxu0 0.0
        %1265 = vmatpush1.msra.mxu0 0.0
        %1266 = vmatprep.subr.mxu0 0.0
        %1267 = vmatpush1.msra.mxu0 0.0
        %1268 = vmatprep.subr.mxu0 0.0
        %1269 = vmatpush1.msra.mxu0 0.0
        %1270 = vmatprep.subr.mxu0 0.0
        %1271 = vmatpush1.msra.mxu0 0.0
        %1272 = vmatprep.subr.mxu0 0.0
        %1273 = vmatpush1.msra.mxu0 0.0
        %1274 = vmatprep.subr.mxu0 0.0
        %1275 = vmatpush1.msra.mxu0 0.0
        %1276 = vmatprep.subr.mxu0 0.0
        %1277 = vmatpush1.msra.mxu0 0.0
        %1278 = vmatprep.subr.mxu0 0.0
        %1279 = vmatpush1.msra.mxu0 0.0
        %1280 = vmatprep.subr.mxu0 0.0
        %1281 = vmatpush1.msra.mxu0 0.0
        %1282 = vmatprep.subr.mxu0 0.0
        %1283 = vmatpush1.msra.mxu0 0.0
        %1284 = vmatprep.subr.mxu0 0.0
        %1285 = vmatpush1.msra.mxu0 0.0
        %1286 = vmatprep.subr.mxu0 0.0
        %1287 = vmatpush1.msra.mxu0 0.0
        %1288 = vmatprep.subr.mxu0 0.0
        %1289 = vmatpush1.msra.mxu0 0.0
        %1290 = vmatprep.subr.mxu0 0.0
        %1291 = vmatpush1.msra.mxu0 0.0
        %1292 = vmatprep.subr.mxu0 0.0
        %1293 = vmatpush1.msra.mxu0 0.0
        %1294 = vmatprep.subr.mxu0 0.0
        %1295 = vmatpush1.msra.mxu0 0.0
        %1296 = vmatprep.subr.mxu0 0.0
        %1297 = vmatpush1.msra.mxu0 0.0
        %1298 = vmatprep.subr.mxu0 0.0
        %1299 = vmatpush1.msra.mxu0 0.0
        %1300 = vmatprep.subr.mxu0 0.0
        %1301 = vmatpush1.msra.mxu0 0.0
        %1302 = vmatprep.subr.mxu0 0.0
        %1303 = vmatpush1.msra.mxu0 0.0
        %1304 = vmatprep.subr.mxu0 0.0
        %1305 = vmatpush1.msra.mxu0 0.0
        %1306 = vmatprep.subr.mxu0 0.0
        %1307 = vmatpush1.msra.mxu0 0.0
        %1308 = vmatprep.subr.mxu0 0.0
        %1309 = vmatpush1.msra.mxu0 0.0
        %1310 = vmatprep.subr.mxu0 0.0
        %1311 = vmatpush1.msra.mxu0 0.0
        %1312 = vmatprep.subr.mxu0 0.0
        %1313 = vmatpush1.msra.mxu0 0.0
        %1314 = vmatprep.mubr.f32.mxu0 0.0
        %1315 = vmatmul.mubr.f32.gmra.mrb[0].mxu0 %v455
        %v1316 = vpop.f32.mrb[0].mxu0
        %v1317 = vadd.f32 0.0, %v1316
        %v1318 = vpop.f32.mrb[0].mxu0
        %1319 = vmatprep.mubr.f32.mxu0 0.0
        %1320 = vmatmul.mubr.f32.gmra.mrb[0].mxu0 %v458
        %v1321 = vpop.f32.mrb[0].mxu0
        %v1322 = vadd.f32 0.0, %v1321
        %v1323 = vpop.f32.mrb[0].mxu0
        %1324 = vdwg.mxu0
        %v1326 = vsel %vm460, %v1244, 0
        %1328 = vmatprep.subr.mxu0 0.0
        %1329 = vmatpush1.msra.mxu0 %v1326
        %1330 = vmatprep.subr.mxu0 0.0
        %1331 = vmatpush1.msra.mxu0 0.0
        %1332 = vmatprep.subr.mxu0 0.0
        %1333 = vmatpush1.msra.mxu0 0.0
        %1334 = vmatprep.subr.mxu0 0.0
        %1335 = vmatpush1.msra.mxu0 0.0
        %1336 = vmatprep.subr.mxu0 0.0
        %1337 = vmatpush1.msra.mxu0 0.0
        %1338 = vmatprep.subr.mxu0 0.0
        %1339 = vmatpush1.msra.mxu0 0.0
        %1340 = vmatprep.subr.mxu0 0.0
        %1341 = vmatpush1.msra.mxu0 0.0
        %1342 = vmatprep.subr.mxu0 0.0
        %1343 = vmatpush1.msra.mxu0 0.0
        %1344 = vmatprep.subr.mxu0 0.0
        %1345 = vmatpush1.msra.mxu0 0.0
        %1346 = vmatprep.subr.mxu0 0.0
        %1347 = vmatpush1.msra.mxu0 0.0
        %1348 = vmatprep.subr.mxu0 0.0
        %1349 = vmatpush1.msra.mxu0 0.0
        %1350 = vmatprep.subr.mxu0 0.0
        %1351 = vmatpush1.msra.mxu0 0.0
        %1352 = vmatprep.subr.mxu0 0.0
        %1353 = vmatpush1.msra.mxu0 0.0
        %1354 = vmatprep.subr.mxu0 0.0
        %1355 = vmatpush1.msra.mxu0 0.0
        %1356 = vmatprep.subr.mxu0 0.0
        %1357 = vmatpush1.msra.mxu0 0.0
        %1358 = vmatprep.subr.mxu0 0.0
        %1359 = vmatpush1.msra.mxu0 0.0
        %1360 = vmatprep.subr.mxu0 0.0
        %1361 = vmatpush1.msra.mxu0 0.0
        %1362 = vmatprep.subr.mxu0 0.0
        %1363 = vmatpush1.msra.mxu0 0.0
        %1364 = vmatprep.subr.mxu0 0.0
        %1365 = vmatpush1.msra.mxu0 0.0
        %1366 = vmatprep.subr.mxu0 0.0
        %1367 = vmatpush1.msra.mxu0 0.0
        %1368 = vmatprep.subr.mxu0 0.0
        %1369 = vmatpush1.msra.mxu0 0.0
        %1370 = vmatprep.subr.mxu0 0.0
        %1371 = vmatpush1.msra.mxu0 0.0
        %1372 = vmatprep.subr.mxu0 0.0
        %1373 = vmatpush1.msra.mxu0 0.0
        %1374 = vmatprep.subr.mxu0 0.0
        %1375 = vmatpush1.msra.mxu0 0.0
        %1376 = vmatprep.subr.mxu0 0.0
        %1377 = vmatpush1.msra.mxu0 0.0
        %1378 = vmatprep.subr.mxu0 0.0
        %1379 = vmatpush1.msra.mxu0 0.0
        %1380 = vmatprep.subr.mxu0 0.0
        %1381 = vmatpush1.msra.mxu0 0.0
        %1382 = vmatprep.subr.mxu0 0.0
        %1383 = vmatpush1.msra.mxu0 0.0
        %1384 = vmatprep.subr.mxu0 0.0
        %1385 = vmatpush1.msra.mxu0 0.0
        %1386 = vmatprep.subr.mxu0 0.0
        %1387 = vmatpush1.msra.mxu0 0.0
        %1388 = vmatprep.subr.mxu0 0.0
        %1389 = vmatpush1.msra.mxu0 0.0
        %1390 = vmatprep.subr.mxu0 0.0
        %1391 = vmatpush1.msra.mxu0 0.0
        %1392 = vmatprep.mubr.f32.mxu0 0.0
        %1393 = vmatmul.mubr.f32.gmra.mrb[0].mxu0 %v540
        %v1394 = vpop.f32.mrb[0].mxu0
        %v1395 = vadd.f32 %v1317, %v1394
        %v1396 = vpop.f32.mrb[0].mxu0
        %1397 = vmatprep.mubr.f32.mxu0 0.0
        %1398 = vmatmul.mubr.f32.gmra.mrb[0].mxu0 %v543
        %v1399 = vpop.f32.mrb[0].mxu0
        %v1400 = vadd.f32 %v1322, %v1399
        %v1401 = vpop.f32.mrb[0].mxu0
        %1402 = vdwg.mxu0
        %s1403 = scalar_lea.vmem [#allocation2], 128
        %v1404 = vld [vmem:[%s1403] sm:$0xff]
        %v1405 = vld [vmem:[%s1403 + $0x8] sm:$0xff]
        %v1406 = vld [vmem:[%s1403 + $0x10] sm:$0xff]
        %v1407 = vld [vmem:[%s1403 + $0x18] sm:$0xff]
        %v1409 = vsel %vm627, %v1166, 0
        %v1412 = vsel %vm627, %v1167, 0
        %1414 = vmatprep.subr.mxu0 0.0
        %1415 = vmatpush1.msra.mxu0 %v1404
        %1416 = vmatprep.subr.mxu0 0.0
        %1417 = vmatpush1.msra.mxu0 %v1405
        %1418 = vmatprep.subr.mxu0 0.0
        %1419 = vmatpush1.msra.mxu0 %v1406
        %1420 = vmatprep.subr.mxu0 0.0
        %1421 = vmatpush1.msra.mxu0 %v1407
        %1422 = vmatprep.subr.mxu0 0.0
        %1423 = vmatpush1.msra.mxu0 0.0
        %1424 = vmatprep.subr.mxu0 0.0
        %1425 = vmatpush1.msra.mxu0 0.0
        %1426 = vmatprep.subr.mxu0 0.0
        %1427 = vmatpush1.msra.mxu0 0.0
        %1428 = vmatprep.subr.mxu0 0.0
        %1429 = vmatpush1.msra.mxu0 0.0
        %1430 = vmatprep.subr.mxu0 0.0
        %1431 = vmatpush1.msra.mxu0 0.0
        %1432 = vmatprep.subr.mxu0 0.0
        %1433 = vmatpush1.msra.mxu0 0.0
        %1434 = vmatprep.subr.mxu0 0.0
        %1435 = vmatpush1.msra.mxu0 0.0
        %1436 = vmatprep.subr.mxu0 0.0
        %1437 = vmatpush1.msra.mxu0 0.0
        %1438 = vmatprep.subr.mxu0 0.0
        %1439 = vmatpush1.msra.mxu0 0.0
        %1440 = vmatprep.subr.mxu0 0.0
        %1441 = vmatpush1.msra.mxu0 0.0
        %1442 = vmatprep.subr.mxu0 0.0
        %1443 = vmatpush1.msra.mxu0 0.0
        %1444 = vmatprep.subr.mxu0 0.0
        %1445 = vmatpush1.msra.mxu0 0.0
        %1446 = vmatprep.subr.mxu0 0.0
        %1447 = vmatpush1.msra.mxu0 0.0
        %1448 = vmatprep.subr.mxu0 0.0
        %1449 = vmatpush1.msra.mxu0 0.0
        %1450 = vmatprep.subr.mxu0 0.0
        %1451 = vmatpush1.msra.mxu0 0.0
        %1452 = vmatprep.subr.mxu0 0.0
        %1453 = vmatpush1.msra.mxu0 0.0
        %1454 = vmatprep.subr.mxu0 0.0
        %1455 = vmatpush1.msra.mxu0 0.0
        %1456 = vmatprep.subr.mxu0 0.0
        %1457 = vmatpush1.msra.mxu0 0.0
        %1458 = vmatprep.subr.mxu0 0.0
        %1459 = vmatpush1.msra.mxu0 0.0
        %1460 = vmatprep.subr.mxu0 0.0
        %1461 = vmatpush1.msra.mxu0 0.0
        %1462 = vmatprep.subr.mxu0 0.0
        %1463 = vmatpush1.msra.mxu0 0.0
        %1464 = vmatprep.subr.mxu0 0.0
        %1465 = vmatpush1.msra.mxu0 0.0
        %1466 = vmatprep.subr.mxu0 0.0
        %1467 = vmatpush1.msra.mxu0 0.0
        %1468 = vmatprep.subr.mxu0 0.0
        %1469 = vmatpush1.msra.mxu0 0.0
        %1470 = vmatprep.subr.mxu0 0.0
        %1471 = vmatpush1.msra.mxu0 0.0
        %1472 = vmatprep.subr.mxu0 0.0
        %1473 = vmatpush1.msra.mxu0 0.0
        %1474 = vmatprep.subr.mxu0 0.0
        %1475 = vmatpush1.msra.mxu0 0.0
        %1476 = vmatprep.subr.mxu0 0.0
        %1477 = vmatpush1.msra.mxu0 0.0
        %1478 = vmatprep.mubr.f32.mxu0 0.0
        %1479 = vmatmul.mubr.f32.gmra.mrb[0].mxu0 %v1409
        %v1480 = vpop.f32.mrb[0].mxu0
        %v1481 = vadd.f32 0.0, %v1480
        %v1482 = vpop.f32.mrb[0].mxu0
        %1483 = vmatprep.mubr.f32.mxu0 0.0
        %1484 = vmatmul.mubr.f32.gmra.mrb[0].mxu0 %v1412
        %v1485 = vpop.f32.mrb[0].mxu0
        %v1486 = vadd.f32 0.0, %v1485
        %v1487 = vpop.f32.mrb[0].mxu0
        %1488 = vdwg.mxu0
        %v1489 = vadd.f32 %v1395, %v1481
        %v1490 = vadd.f32 %v1400, %v1486
        %s1491 = scalar_lea.vmem [#allocation2], 160
        %v1492 = vld [vmem:[%s1491] sm:$0xff]
        %v1493 = vld [vmem:[%s1491 + $0x8] sm:$0xff]
        %v1494 = vld [vmem:[%s1491 + $0x10] sm:$0xff]
        %v1495 = vld [vmem:[%s1491 + $0x18] sm:$0xff]
        %v1497 = vsel %vm627, %v1235, 0
        %v1500 = vsel %vm627, %v1240, 0
        %1502 = vmatprep.subr.mxu0 0.0
        %1503 = vmatpush1.msra.mxu0 %v1492
        %1504 = vmatprep.subr.mxu0 0.0
        %1505 = vmatpush1.msra.mxu0 %v1493
        %1506 = vmatprep.subr.mxu0 0.0
        %1507 = vmatpush1.msra.mxu0 %v1494
        %1508 = vmatprep.subr.mxu0 0.0
        %1509 = vmatpush1.msra.mxu0 %v1495
        %1510 = vmatprep.subr.mxu0 0.0
        %1511 = vmatpush1.msra.mxu0 0.0
        %1512 = vmatprep.subr.mxu0 0.0
        %1513 = vmatpush1.msra.mxu0 0.0
        %1514 = vmatprep.subr.mxu0 0.0
        %1515 = vmatpush1.msra.mxu0 0.0
        %1516 = vmatprep.subr.mxu0 0.0
        %1517 = vmatpush1.msra.mxu0 0.0
        %1518 = vmatprep.subr.mxu0 0.0
        %1519 = vmatpush1.msra.mxu0 0.0
        %1520 = vmatprep.subr.mxu0 0.0
        %1521 = vmatpush1.msra.mxu0 0.0
        %1522 = vmatprep.subr.mxu0 0.0
        %1523 = vmatpush1.msra.mxu0 0.0
        %1524 = vmatprep.subr.mxu0 0.0
        %1525 = vmatpush1.msra.mxu0 0.0
        %1526 = vmatprep.subr.mxu0 0.0
        %1527 = vmatpush1.msra.mxu0 0.0
        %1528 = vmatprep.subr.mxu0 0.0
        %1529 = vmatpush1.msra.mxu0 0.0
        %1530 = vmatprep.subr.mxu0 0.0
        %1531 = vmatpush1.msra.mxu0 0.0
        %1532 = vmatprep.subr.mxu0 0.0
        %1533 = vmatpush1.msra.mxu0 0.0
        %1534 = vmatprep.subr.mxu0 0.0
        %1535 = vmatpush1.msra.mxu0 0.0
        %1536 = vmatprep.subr.mxu0 0.0
        %1537 = vmatpush1.msra.mxu0 0.0
        %1538 = vmatprep.subr.mxu0 0.0
        %1539 = vmatpush1.msra.mxu0 0.0
        %1540 = vmatprep.subr.mxu0 0.0
        %1541 = vmatpush1.msra.mxu0 0.0
        %1542 = vmatprep.subr.mxu0 0.0
        %1543 = vmatpush1.msra.mxu0 0.0
        %1544 = vmatprep.subr.mxu0 0.0
        %1545 = vmatpush1.msra.mxu0 0.0
        %1546 = vmatprep.subr.mxu0 0.0
        %1547 = vmatpush1.msra.mxu0 0.0
        %1548 = vmatprep.subr.mxu0 0.0
        %1549 = vmatpush1.msra.mxu0 0.0
        %1550 = vmatprep.subr.mxu0 0.0
        %1551 = vmatpush1.msra.mxu0 0.0
        %1552 = vmatprep.subr.mxu0 0.0
        %1553 = vmatpush1.msra.mxu0 0.0
        %1554 = vmatprep.subr.mxu0 0.0
        %1555 = vmatpush1.msra.mxu0 0.0
        %1556 = vmatprep.subr.mxu0 0.0
        %1557 = vmatpush1.msra.mxu0 0.0
        %1558 = vmatprep.subr.mxu0 0.0
        %1559 = vmatpush1.msra.mxu0 0.0
        %1560 = vmatprep.subr.mxu0 0.0
        %1561 = vmatpush1.msra.mxu0 0.0
        %1562 = vmatprep.subr.mxu0 0.0
        %1563 = vmatpush1.msra.mxu0 0.0
        %1564 = vmatprep.subr.mxu0 0.0
        %1565 = vmatpush1.msra.mxu0 0.0
        %1566 = vmatprep.mubr.f32.mxu0 0.0
        %1567 = vmatmul.mubr.f32.gmra.mrb[0].mxu0 %v1497
        %v1568 = vpop.f32.mrb[0].mxu0
        %v1569 = vadd.f32 0.0, %v1568
        %v1570 = vpop.f32.mrb[0].mxu0
        %1571 = vmatprep.mubr.f32.mxu0 0.0
        %1572 = vmatmul.mubr.f32.gmra.mrb[0].mxu0 %v1500
        %v1573 = vpop.f32.mrb[0].mxu0
        %v1574 = vadd.f32 0.0, %v1573
        %v1575 = vpop.f32.mrb[0].mxu0
        %1576 = vdwg.mxu0
        %v1577 = vadd.f32 %v1489, %v1569
        %v1578 = vadd.f32 %v1490, %v1574
        %s1579 = scalar_lea.vmem %s5, 2
        %v1580 = vld [vmem:[%s1579] sm:$0x1]
        %v1582 = vlaneseq
        %v1583 = vshrl.u32 %v1582, 7
        %v1584 = vsub.s32 0, %v1583
        %v1585 = vrot.slane %v1580, %v1584
        %v1587 = vadd.f32 %v1577, %v1585
        %v1588 = vadd.f32 %v1578, %v1585
        %v1589 = vtanh.pop %v1587
        %v1590 = vtanh.pop %v1588
        %v1591 = vmul.f32 %v1163, %v289
        %v1592 = vmul.f32 %v1165, %v290
        %v1593 = vsub.f32 1.0, %v1163
        %v1594 = vsub.f32 1.0, %v1165
        %v1595 = vmul.f32 %v1593, %v1589
        %v1596 = vmul.f32 %v1594, %v1590
        %v1597 = vadd.f32 %v1591, %v1595
        %v1598 = vadd.f32 %v1592, %v1596
        %1599 = vst.msk [vmem:[%s286] sm:$0xff] %vm627, %v1597
        %1600 = vst.msk [vmem:[%s286 + $0x8] sm:$0xff] %vm627, %v1598
        %p1601 = scmp.lt.s32.totalorder %s18, 1
        %s1602 = scalar_select %p1601, %s18, 1
        %s1603 = smul.addr %s1602, 2
        %s1604 = smul.addr %s1603, 8
        %s1605 = scalar_lea.vmem %s6, %s1604
        // Predicated region
        $region49: #{ugcgru_cell_forward.1} parent=43 // pred_check
          %p1606 = pneg %p172
        $region50: #{ugcgru_cell_forward.1} parent=43 // pred_check_branch
          %1608 = sbr.rel (%p1606) target = $region52
        $region51: #{ugcgru_cell_forward.1} parent=43 // pred_region
          _
        $region52: #{ugcgru_cell_forward.1} parent=43 // pred_fallthru
          _
      $region44: #{ugcgru_cell_forward.1} parent=5 // pred_fallthru
        _
      %p1609 = scmp.le.s32.totalorder 2, %s13
      // Predicated region
      $region53: #{ugcgru_cell_forward.1} parent=5 // pred_check
        %p1610 = pneg %p1609
      $region54: #{ugcgru_cell_forward.1} parent=5 // pred_check_branch
        %1612 = sbr.rel (%p1610) target = $region56
      $region55: #{ugcgru_cell_forward.1} parent=5 // pred_region
        %s1613 = ssub.s32 %s13, 2
        // Predicated region
        $region57: #{ugcgru_cell_forward.1} parent=55 // pred_check
          %p1614 = pneg %p178
        $region58: #{ugcgru_cell_forward.1} parent=55 // pred_check_branch
          %1616 = sbr.rel (%p1614) target = $region60
        $region59: #{ugcgru_cell_forward.1} parent=55 // pred_region
          %p1617 = scmp.lt.s32.totalorder %s19, 1
          %s1618 = scalar_select %p1617, %s19, 1
          %s1619 = smul.addr %s1618, 2
          %s1620 = smul.addr %s1619, 8
          %s1621 = scalar_lea.vmem %s6, %s1620
        $region60: #{ugcgru_cell_forward.1} parent=55 // pred_fallthru
          _
      $region56: #{ugcgru_cell_forward.1} parent=5 // pred_fallthru
        _
    $region6: #{ugcgru_cell_forward.1} parent=1 // loop_footer
      %s17 = sadd.s32 1, %s13
    $region7: #{ugcgru_cell_forward.1} parent=1 // loop_footer_branch
      %12 = sbr.rel target = $region3
    $region8: #{ugcgru_cell_forward.1} parent=1 // loop_exit
      _
    %1622 = vsyncpa [#allocation3], 1
    %s1623 = scalar_lea.sflag [#allocation3], 1
    %1624 = vsyncpa %s1623, 1

</llo_original>
